<compile_context>
chip_gen: v7x
topology: tpu7x:2x2x1
jax: 0.10.0
libtpu: 0.0.40
codegen_flags: <defaults>
</compile_context>

<pallas_src>
import jax
import jax.numpy as jnp
from jax.experimental import pallas as pl
from jax.experimental.pallas import tpu as pltpu


def _mlp_kernel(w0_ref, b0_ref,
                w1_ref, b1_ref,
                w2_ref, b2_ref,
                wh_ref, bh_ref,
                x_ref, o_ref):
    # x_ref: (4, TBS, 128)  -- feature-major, batch folded onto (sublane, lane)
    # o_ref: (NA, TBS, 128)
    n_in_feats = x_ref.shape[0]

    def layer(rows_in, w_ref, b_ref, relu):
        # rows_in: list of (TBS, 128) f32 tiles, one per input feature.
        n_in, n_out = w_ref.shape
        out_rows = []
        for j in range(n_out):
            acc = rows_in[0] * w_ref[0, j]          # scalar-broadcast mul (VPU)
            for i in range(1, n_in):
                acc = acc + rows_in[i] * w_ref[i, j]  # scalar-broadcast FMA (VPU)
            acc = acc + b_ref[0, j]
            if relu:
                acc = jnp.maximum(acc, 0.0)
            out_rows.append(acc)
        return out_rows

    x_rows = [x_ref[i] for i in range(n_in_feats)]

    h = layer(x_rows, w0_ref, b0_ref, relu=True)    # stump: 4 -> 8 + ReLU
    h = layer(h, w1_ref, b1_ref, relu=True)         # body[0]: 8 -> 8 + ReLU
    h = layer(h, w2_ref, b2_ref, relu=True)         # body[1]: 8 -> 8 + ReLU
    out = layer(h, wh_ref, bh_ref, relu=False)      # head: 8 -> num_actions

    for j in range(len(out)):                       # lane-dense stores
        o_ref[j] = out[j]


def cartpole_mlp_value_estimator(x, params, *, max_lane_tiles=16):
    """x: (B, 4) float32. params: dict of (in, out) weights / (1, out) biases.
    Returns (B, num_actions) float32."""
    B, F = x.shape
    num_actions = params["wh"].shape[1]

    # Fold the batch onto (sublane, lane): groups of 128 lanes, `tbs` sublane
    # groups per grid step (tbs=16 -> 2048 batch elems / step).
    nb = pl.cdiv(B, 128)                     # number of 128-lane batch groups
    tbs = min(max_lane_tiles, nb)            # sublane-tile depth per grid step
    nbp = pl.cdiv(nb, tbs) * tbs             # pad group count to a tile multiple
    b_padded = nbp * 128

    xp = jnp.pad(x, ((0, b_padded - B), (0, 0)))
    x_fm = xp.T.reshape(F, nbp, 128)         # feature-major, batch on (sub, lane)

    smem = pl.BlockSpec(memory_space=pltpu.MemorySpace.SMEM)
    x_spec = pl.BlockSpec((F, tbs, 128), lambda i: (0, i, 0))
    o_spec = pl.BlockSpec((num_actions, tbs, 128), lambda i: (0, i, 0))

    out_fm = pl.pallas_call(
        _mlp_kernel,
        out_shape=jax.ShapeDtypeStruct((num_actions, nbp, 128), jnp.float32),
        grid=(nbp // tbs,),
        in_specs=[smem, smem, smem, smem, smem, smem, smem, smem, x_spec],
        out_specs=o_spec,
        compiler_params=pltpu.CompilerParams(
            dimension_semantics=("parallel",)),
    )(params["w0"], params["b0"],
      params["w1"], params["b1"],
      params["w2"], params["b2"],
      params["wh"], params["bh"],
      x_fm)

    # (NA, nbp, 128) -> (NA, Bp) -> slice -> (B, NA)
    return out_fm.reshape(num_actions, b_padded)[:, :B].T


def init_params(key, body_fets=(8, 8, 8), num_actions=3):
    """Deterministic init mimicking PyTorch Linear defaults (uniform +-1/sqrt(fan_in)).
    Weights stored as (in_features, out_features); biases as (1, out_features)."""
    dims = [(4, body_fets[0]),
            (body_fets[0], body_fets[1]),
            (body_fets[1], body_fets[2]),
            (body_fets[2], num_actions)]
    names = ["0", "1", "2", "h"]
    params = {}
    for (fan_in, fan_out), name in zip(dims, names):
        key, kw, kb = jax.random.split(key, 3)
        bound = 1.0 / jnp.sqrt(fan_in)
        params[f"w{name}"] = jax.random.uniform(
            kw, (fan_in, fan_out), jnp.float32, minval=-bound, maxval=bound)
        params[f"b{name}"] = jax.random.uniform(
            kb, (1, fan_out), jnp.float32, minval=-bound, maxval=bound)
    return params


def _reference(x, params):
    h = jnp.maximum(x @ params["w0"] + params["b0"], 0.0)
    h = jnp.maximum(h @ params["w1"] + params["b1"], 0.0)
    h = jnp.maximum(h @ params["w2"] + params["b2"], 0.0)
    return h @ params["wh"] + params["bh"]


if __name__ == "__main__":
    key = jax.random.PRNGKey(0)
    kx1, kx2, kp = jax.random.split(key, 3)

    params = init_params(kp, body_fets=(8, 8, 8), num_actions=3)

    # Small batch (module's natural scale; correctness check).
    x_small = jax.random.normal(kx1, (2, 4), jnp.float32)
    out_small = jax.block_until_ready(cartpole_mlp_value_estimator(x_small, params))
    ref_small = _reference(x_small, params)
    assert out_small.shape == (2, 3), out_small.shape
    assert jnp.allclose(out_small, ref_small, atol=1e-5, rtol=1e-4), (out_small, ref_small)

    # Larger batch: exercises the batch grid (2 tiles of 2048), padding, and
    # double-buffered DMA / "parallel" megacore sharding.
    x_large = jax.random.normal(kx2, (4096, 4), jnp.float32)
    out_large = jax.block_until_ready(cartpole_mlp_value_estimator(x_large, params))
    ref_large = _reference(x_large, params)
    assert out_large.shape == (4096, 3), out_large.shape
    assert jnp.allclose(out_large, ref_large, atol=1e-5, rtol=1e-4)

    print("KERNEL_OK")
</pallas_src>

<mosaic_0001>
module attributes {stable_mosaic.version = 11 : i64} {
  func.func @_mlp_kernel(%arg0: i32, %arg1: memref<4x8xf32, #tpu.memory_space<smem>>, %arg2: memref<1x8xf32, #tpu.memory_space<smem>>, %arg3: memref<8x8xf32, #tpu.memory_space<smem>>, %arg4: memref<1x8xf32, #tpu.memory_space<smem>>, %arg5: memref<8x8xf32, #tpu.memory_space<smem>>, %arg6: memref<1x8xf32, #tpu.memory_space<smem>>, %arg7: memref<8x3xf32, #tpu.memory_space<smem>>, %arg8: memref<1x3xf32, #tpu.memory_space<smem>>, %arg9: memref<4x1x128xf32, #tpu.memory_space<vmem>>, %arg10: memref<3x1x128xf32, #tpu.memory_space<vmem>>) attributes {dimension_semantics = [#tpu.dimension_semantics<parallel>], iteration_bounds = array<i64: 1>, scalar_prefetch = 0 : i64, scratch_operands = 0 : i64, tpu.core_type = #tpu.core_type<tc>, window_params = [{transform_indices = @transform_0, window_bounds = array<i64: 4, 8>}, {transform_indices = @transform_1, window_bounds = array<i64: 1, 8>}, {transform_indices = @transform_2, window_bounds = array<i64: 8, 8>}, {transform_indices = @transform_3, window_bounds = array<i64: 1, 8>}, {transform_indices = @transform_4, window_bounds = array<i64: 8, 8>}, {transform_indices = @transform_5, window_bounds = array<i64: 1, 8>}, {transform_indices = @transform_6, window_bounds = array<i64: 8, 3>}, {transform_indices = @transform_7, window_bounds = array<i64: 1, 3>}, {transform_indices = @transform_8, window_bounds = array<i64: 4, 1, 128>}, {transform_indices = @transform_9, window_bounds = array<i64: 3, 1, 128>}]} {
    %c0 = arith.constant 0 : index
    %c0_0 = arith.constant 0 : index
    %c0_1 = arith.constant 0 : index
    %0 = vector.load %arg9[%c0, %c0_0, %c0_1] : memref<4x1x128xf32, #tpu.memory_space<vmem>>, vector<1x1x128xf32>
    %1 = vector.shape_cast %0 : vector<1x1x128xf32> to vector<1x128xf32>
    %c1 = arith.constant 1 : index
    %c0_2 = arith.constant 0 : index
    %c0_3 = arith.constant 0 : index
    %2 = vector.load %arg9[%c1, %c0_2, %c0_3] : memref<4x1x128xf32, #tpu.memory_space<vmem>>, vector<1x1x128xf32>
    %3 = vector.shape_cast %2 : vector<1x1x128xf32> to vector<1x128xf32>
    %c2 = arith.constant 2 : index
    %c0_4 = arith.constant 0 : index
    %c0_5 = arith.constant 0 : index
    %4 = vector.load %arg9[%c2, %c0_4, %c0_5] : memref<4x1x128xf32, #tpu.memory_space<vmem>>, vector<1x1x128xf32>
    %5 = vector.shape_cast %4 : vector<1x1x128xf32> to vector<1x128xf32>
    %c3 = arith.constant 3 : index
    %c0_6 = arith.constant 0 : index
    %c0_7 = arith.constant 0 : index
    %6 = vector.load %arg9[%c3, %c0_6, %c0_7] : memref<4x1x128xf32, #tpu.memory_space<vmem>>, vector<1x1x128xf32>
    %7 = vector.shape_cast %6 : vector<1x1x128xf32> to vector<1x128xf32>
    %c0_8 = arith.constant 0 : index
    %c0_9 = arith.constant 0 : index
    %8 = memref.load %arg1[%c0_8, %c0_9] : memref<4x8xf32, #tpu.memory_space<smem>>
    %9 = vector.broadcast %8 : f32 to vector<1x128xf32>
    %10 = arith.mulf %1, %9 : vector<1x128xf32>
    %c1_10 = arith.constant 1 : index
    %c0_11 = arith.constant 0 : index
    %11 = memref.load %arg1[%c1_10, %c0_11] : memref<4x8xf32, #tpu.memory_space<smem>>
    %12 = vector.broadcast %11 : f32 to vector<1x128xf32>
    %13 = arith.mulf %3, %12 : vector<1x128xf32>
    %14 = arith.addf %10, %13 : vector<1x128xf32>
    %c2_12 = arith.constant 2 : index
    %c0_13 = arith.constant 0 : index
    %15 = memref.load %arg1[%c2_12, %c0_13] : memref<4x8xf32, #tpu.memory_space<smem>>
    %16 = vector.broadcast %15 : f32 to vector<1x128xf32>
    %17 = arith.mulf %5, %16 : vector<1x128xf32>
    %18 = arith.addf %14, %17 : vector<1x128xf32>
    %c3_14 = arith.constant 3 : index
    %c0_15 = arith.constant 0 : index
    %19 = memref.load %arg1[%c3_14, %c0_15] : memref<4x8xf32, #tpu.memory_space<smem>>
    %20 = vector.broadcast %19 : f32 to vector<1x128xf32>
    %21 = arith.mulf %7, %20 : vector<1x128xf32>
    %22 = arith.addf %18, %21 : vector<1x128xf32>
    %c0_16 = arith.constant 0 : index
    %c0_17 = arith.constant 0 : index
    %23 = memref.load %arg2[%c0_16, %c0_17] : memref<1x8xf32, #tpu.memory_space<smem>>
    %24 = vector.broadcast %23 : f32 to vector<1x128xf32>
    %25 = arith.addf %22, %24 : vector<1x128xf32>
    %cst = arith.constant 0.000000e+00 : f32
    %26 = vector.broadcast %cst : f32 to vector<1x128xf32>
    %27 = arith.maximumf %25, %26 : vector<1x128xf32>
    %c0_18 = arith.constant 0 : index
    %c1_19 = arith.constant 1 : index
    %28 = memref.load %arg1[%c0_18, %c1_19] : memref<4x8xf32, #tpu.memory_space<smem>>
    %29 = vector.broadcast %28 : f32 to vector<1x128xf32>
    %30 = arith.mulf %1, %29 : vector<1x128xf32>
    %c1_20 = arith.constant 1 : index
    %c1_21 = arith.constant 1 : index
    %31 = memref.load %arg1[%c1_20, %c1_21] : memref<4x8xf32, #tpu.memory_space<smem>>
    %32 = vector.broadcast %31 : f32 to vector<1x128xf32>
    %33 = arith.mulf %3, %32 : vector<1x128xf32>
    %34 = arith.addf %30, %33 : vector<1x128xf32>
    %c2_22 = arith.constant 2 : index
    %c1_23 = arith.constant 1 : index
    %35 = memref.load %arg1[%c2_22, %c1_23] : memref<4x8xf32, #tpu.memory_space<smem>>
    %36 = vector.broadcast %35 : f32 to vector<1x128xf32>
    %37 = arith.mulf %5, %36 : vector<1x128xf32>
    %38 = arith.addf %34, %37 : vector<1x128xf32>
    %c3_24 = arith.constant 3 : index
    %c1_25 = arith.constant 1 : index
    %39 = memref.load %arg1[%c3_24, %c1_25] : memref<4x8xf32, #tpu.memory_space<smem>>
    %40 = vector.broadcast %39 : f32 to vector<1x128xf32>
    %41 = arith.mulf %7, %40 : vector<1x128xf32>
    %42 = arith.addf %38, %41 : vector<1x128xf32>
    %c0_26 = arith.constant 0 : index
    %c1_27 = arith.constant 1 : index
    %43 = memref.load %arg2[%c0_26, %c1_27] : memref<1x8xf32, #tpu.memory_space<smem>>
    %44 = vector.broadcast %43 : f32 to vector<1x128xf32>
    %45 = arith.addf %42, %44 : vector<1x128xf32>
    %cst_28 = arith.constant 0.000000e+00 : f32
    %46 = vector.broadcast %cst_28 : f32 to vector<1x128xf32>
    %47 = arith.maximumf %45, %46 : vector<1x128xf32>
    %c0_29 = arith.constant 0 : index
    %c2_30 = arith.constant 2 : index
    %48 = memref.load %arg1[%c0_29, %c2_30] : memref<4x8xf32, #tpu.memory_space<smem>>
    %49 = vector.broadcast %48 : f32 to vector<1x128xf32>
    %50 = arith.mulf %1, %49 : vector<1x128xf32>
    %c1_31 = arith.constant 1 : index
    %c2_32 = arith.constant 2 : index
    %51 = memref.load %arg1[%c1_31, %c2_32] : memref<4x8xf32, #tpu.memory_space<smem>>
    %52 = vector.broadcast %51 : f32 to vector<1x128xf32>
    %53 = arith.mulf %3, %52 : vector<1x128xf32>
    %54 = arith.addf %50, %53 : vector<1x128xf32>
    %c2_33 = arith.constant 2 : index
    %c2_34 = arith.constant 2 : index
    %55 = memref.load %arg1[%c2_33, %c2_34] : memref<4x8xf32, #tpu.memory_space<smem>>
    %56 = vector.broadcast %55 : f32 to vector<1x128xf32>
    %57 = arith.mulf %5, %56 : vector<1x128xf32>
    %58 = arith.addf %54, %57 : vector<1x128xf32>
    %c3_35 = arith.constant 3 : index
    %c2_36 = arith.constant 2 : index
    %59 = memref.load %arg1[%c3_35, %c2_36] : memref<4x8xf32, #tpu.memory_space<smem>>
    %60 = vector.broadcast %59 : f32 to vector<1x128xf32>
    %61 = arith.mulf %7, %60 : vector<1x128xf32>
    %62 = arith.addf %58, %61 : vector<1x128xf32>
    %c0_37 = arith.constant 0 : index
    %c2_38 = arith.constant 2 : index
    %63 = memref.load %arg2[%c0_37, %c2_38] : memref<1x8xf32, #tpu.memory_space<smem>>
    %64 = vector.broadcast %63 : f32 to vector<1x128xf32>
    %65 = arith.addf %62, %64 : vector<1x128xf32>
    %cst_39 = arith.constant 0.000000e+00 : f32
    %66 = vector.broadcast %cst_39 : f32 to vector<1x128xf32>
    %67 = arith.maximumf %65, %66 : vector<1x128xf32>
    %c0_40 = arith.constant 0 : index
    %c3_41 = arith.constant 3 : index
    %68 = memref.load %arg1[%c0_40, %c3_41] : memref<4x8xf32, #tpu.memory_space<smem>>
    %69 = vector.broadcast %68 : f32 to vector<1x128xf32>
    %70 = arith.mulf %1, %69 : vector<1x128xf32>
    %c1_42 = arith.constant 1 : index
    %c3_43 = arith.constant 3 : index
    %71 = memref.load %arg1[%c1_42, %c3_43] : memref<4x8xf32, #tpu.memory_space<smem>>
    %72 = vector.broadcast %71 : f32 to vector<1x128xf32>
    %73 = arith.mulf %3, %72 : vector<1x128xf32>
    %74 = arith.addf %70, %73 : vector<1x128xf32>
    %c2_44 = arith.constant 2 : index
    %c3_45 = arith.constant 3 : index
    %75 = memref.load %arg1[%c2_44, %c3_45] : memref<4x8xf32, #tpu.memory_space<smem>>
    %76 = vector.broadcast %75 : f32 to vector<1x128xf32>
    %77 = arith.mulf %5, %76 : vector<1x128xf32>
    %78 = arith.addf %74, %77 : vector<1x128xf32>
    %c3_46 = arith.constant 3 : index
    %c3_47 = arith.constant 3 : index
    %79 = memref.load %arg1[%c3_46, %c3_47] : memref<4x8xf32, #tpu.memory_space<smem>>
    %80 = vector.broadcast %79 : f32 to vector<1x128xf32>
    %81 = arith.mulf %7, %80 : vector<1x128xf32>
    %82 = arith.addf %78, %81 : vector<1x128xf32>
    %c0_48 = arith.constant 0 : index
    %c3_49 = arith.constant 3 : index
    %83 = memref.load %arg2[%c0_48, %c3_49] : memref<1x8xf32, #tpu.memory_space<smem>>
    %84 = vector.broadcast %83 : f32 to vector<1x128xf32>
    %85 = arith.addf %82, %84 : vector<1x128xf32>
    %cst_50 = arith.constant 0.000000e+00 : f32
    %86 = vector.broadcast %cst_50 : f32 to vector<1x128xf32>
    %87 = arith.maximumf %85, %86 : vector<1x128xf32>
    %c0_51 = arith.constant 0 : index
    %c4 = arith.constant 4 : index
    %88 = memref.load %arg1[%c0_51, %c4] : memref<4x8xf32, #tpu.memory_space<smem>>
    %89 = vector.broadcast %88 : f32 to vector<1x128xf32>
    %90 = arith.mulf %1, %89 : vector<1x128xf32>
    %c1_52 = arith.constant 1 : index
    %c4_53 = arith.constant 4 : index
    %91 = memref.load %arg1[%c1_52, %c4_53] : memref<4x8xf32, #tpu.memory_space<smem>>
    %92 = vector.broadcast %91 : f32 to vector<1x128xf32>
    %93 = arith.mulf %3, %92 : vector<1x128xf32>
    %94 = arith.addf %90, %93 : vector<1x128xf32>
    %c2_54 = arith.constant 2 : index
    %c4_55 = arith.constant 4 : index
    %95 = memref.load %arg1[%c2_54, %c4_55] : memref<4x8xf32, #tpu.memory_space<smem>>
    %96 = vector.broadcast %95 : f32 to vector<1x128xf32>
    %97 = arith.mulf %5, %96 : vector<1x128xf32>
    %98 = arith.addf %94, %97 : vector<1x128xf32>
    %c3_56 = arith.constant 3 : index
    %c4_57 = arith.constant 4 : index
    %99 = memref.load %arg1[%c3_56, %c4_57] : memref<4x8xf32, #tpu.memory_space<smem>>
    %100 = vector.broadcast %99 : f32 to vector<1x128xf32>
    %101 = arith.mulf %7, %100 : vector<1x128xf32>
    %102 = arith.addf %98, %101 : vector<1x128xf32>
    %c0_58 = arith.constant 0 : index
    %c4_59 = arith.constant 4 : index
    %103 = memref.load %arg2[%c0_58, %c4_59] : memref<1x8xf32, #tpu.memory_space<smem>>
    %104 = vector.broadcast %103 : f32 to vector<1x128xf32>
    %105 = arith.addf %102, %104 : vector<1x128xf32>
    %cst_60 = arith.constant 0.000000e+00 : f32
    %106 = vector.broadcast %cst_60 : f32 to vector<1x128xf32>
    %107 = arith.maximumf %105, %106 : vector<1x128xf32>
    %c0_61 = arith.constant 0 : index
    %c5 = arith.constant 5 : index
    %108 = memref.load %arg1[%c0_61, %c5] : memref<4x8xf32, #tpu.memory_space<smem>>
    %109 = vector.broadcast %108 : f32 to vector<1x128xf32>
    %110 = arith.mulf %1, %109 : vector<1x128xf32>
    %c1_62 = arith.constant 1 : index
    %c5_63 = arith.constant 5 : index
    %111 = memref.load %arg1[%c1_62, %c5_63] : memref<4x8xf32, #tpu.memory_space<smem>>
    %112 = vector.broadcast %111 : f32 to vector<1x128xf32>
    %113 = arith.mulf %3, %112 : vector<1x128xf32>
    %114 = arith.addf %110, %113 : vector<1x128xf32>
    %c2_64 = arith.constant 2 : index
    %c5_65 = arith.constant 5 : index
    %115 = memref.load %arg1[%c2_64, %c5_65] : memref<4x8xf32, #tpu.memory_space<smem>>
    %116 = vector.broadcast %115 : f32 to vector<1x128xf32>
    %117 = arith.mulf %5, %116 : vector<1x128xf32>
    %118 = arith.addf %114, %117 : vector<1x128xf32>
    %c3_66 = arith.constant 3 : index
    %c5_67 = arith.constant 5 : index
    %119 = memref.load %arg1[%c3_66, %c5_67] : memref<4x8xf32, #tpu.memory_space<smem>>
    %120 = vector.broadcast %119 : f32 to vector<1x128xf32>
    %121 = arith.mulf %7, %120 : vector<1x128xf32>
    %122 = arith.addf %118, %121 : vector<1x128xf32>
    %c0_68 = arith.constant 0 : index
    %c5_69 = arith.constant 5 : index
    %123 = memref.load %arg2[%c0_68, %c5_69] : memref<1x8xf32, #tpu.memory_space<smem>>
    %124 = vector.broadcast %123 : f32 to vector<1x128xf32>
    %125 = arith.addf %122, %124 : vector<1x128xf32>
    %cst_70 = arith.constant 0.000000e+00 : f32
    %126 = vector.broadcast %cst_70 : f32 to vector<1x128xf32>
    %127 = arith.maximumf %125, %126 : vector<1x128xf32>
    %c0_71 = arith.constant 0 : index
    %c6 = arith.constant 6 : index
    %128 = memref.load %arg1[%c0_71, %c6] : memref<4x8xf32, #tpu.memory_space<smem>>
    %129 = vector.broadcast %128 : f32 to vector<1x128xf32>
    %130 = arith.mulf %1, %129 : vector<1x128xf32>
    %c1_72 = arith.constant 1 : index
    %c6_73 = arith.constant 6 : index
    %131 = memref.load %arg1[%c1_72, %c6_73] : memref<4x8xf32, #tpu.memory_space<smem>>
    %132 = vector.broadcast %131 : f32 to vector<1x128xf32>
    %133 = arith.mulf %3, %132 : vector<1x128xf32>
    %134 = arith.addf %130, %133 : vector<1x128xf32>
    %c2_74 = arith.constant 2 : index
    %c6_75 = arith.constant 6 : index
    %135 = memref.load %arg1[%c2_74, %c6_75] : memref<4x8xf32, #tpu.memory_space<smem>>
    %136 = vector.broadcast %135 : f32 to vector<1x128xf32>
    %137 = arith.mulf %5, %136 : vector<1x128xf32>
    %138 = arith.addf %134, %137 : vector<1x128xf32>
    %c3_76 = arith.constant 3 : index
    %c6_77 = arith.constant 6 : index
    %139 = memref.load %arg1[%c3_76, %c6_77] : memref<4x8xf32, #tpu.memory_space<smem>>
    %140 = vector.broadcast %139 : f32 to vector<1x128xf32>
    %141 = arith.mulf %7, %140 : vector<1x128xf32>
    %142 = arith.addf %138, %141 : vector<1x128xf32>
    %c0_78 = arith.constant 0 : index
    %c6_79 = arith.constant 6 : index
    %143 = memref.load %arg2[%c0_78, %c6_79] : memref<1x8xf32, #tpu.memory_space<smem>>
    %144 = vector.broadcast %143 : f32 to vector<1x128xf32>
    %145 = arith.addf %142, %144 : vector<1x128xf32>
    %cst_80 = arith.constant 0.000000e+00 : f32
    %146 = vector.broadcast %cst_80 : f32 to vector<1x128xf32>
    %147 = arith.maximumf %145, %146 : vector<1x128xf32>
    %c0_81 = arith.constant 0 : index
    %c7 = arith.constant 7 : index
    %148 = memref.load %arg1[%c0_81, %c7] : memref<4x8xf32, #tpu.memory_space<smem>>
    %149 = vector.broadcast %148 : f32 to vector<1x128xf32>
    %150 = arith.mulf %1, %149 : vector<1x128xf32>
    %c1_82 = arith.constant 1 : index
    %c7_83 = arith.constant 7 : index
    %151 = memref.load %arg1[%c1_82, %c7_83] : memref<4x8xf32, #tpu.memory_space<smem>>
    %152 = vector.broadcast %151 : f32 to vector<1x128xf32>
    %153 = arith.mulf %3, %152 : vector<1x128xf32>
    %154 = arith.addf %150, %153 : vector<1x128xf32>
    %c2_84 = arith.constant 2 : index
    %c7_85 = arith.constant 7 : index
    %155 = memref.load %arg1[%c2_84, %c7_85] : memref<4x8xf32, #tpu.memory_space<smem>>
    %156 = vector.broadcast %155 : f32 to vector<1x128xf32>
    %157 = arith.mulf %5, %156 : vector<1x128xf32>
    %158 = arith.addf %154, %157 : vector<1x128xf32>
    %c3_86 = arith.constant 3 : index
    %c7_87 = arith.constant 7 : index
    %159 = memref.load %arg1[%c3_86, %c7_87] : memref<4x8xf32, #tpu.memory_space<smem>>
    %160 = vector.broadcast %159 : f32 to vector<1x128xf32>
    %161 = arith.mulf %7, %160 : vector<1x128xf32>
    %162 = arith.addf %158, %161 : vector<1x128xf32>
    %c0_88 = arith.constant 0 : index
    %c7_89 = arith.constant 7 : index
    %163 = memref.load %arg2[%c0_88, %c7_89] : memref<1x8xf32, #tpu.memory_space<smem>>
    %164 = vector.broadcast %163 : f32 to vector<1x128xf32>
    %165 = arith.addf %162, %164 : vector<1x128xf32>
    %cst_90 = arith.constant 0.000000e+00 : f32
    %166 = vector.broadcast %cst_90 : f32 to vector<1x128xf32>
    %167 = arith.maximumf %165, %166 : vector<1x128xf32>
    %c0_91 = arith.constant 0 : index
    %c0_92 = arith.constant 0 : index
    %168 = memref.load %arg3[%c0_91, %c0_92] : memref<8x8xf32, #tpu.memory_space<smem>>
    %169 = vector.broadcast %168 : f32 to vector<1x128xf32>
    %170 = arith.mulf %27, %169 : vector<1x128xf32>
    %c1_93 = arith.constant 1 : index
    %c0_94 = arith.constant 0 : index
    %171 = memref.load %arg3[%c1_93, %c0_94] : memref<8x8xf32, #tpu.memory_space<smem>>
    %172 = vector.broadcast %171 : f32 to vector<1x128xf32>
    %173 = arith.mulf %47, %172 : vector<1x128xf32>
    %174 = arith.addf %170, %173 : vector<1x128xf32>
    %c2_95 = arith.constant 2 : index
    %c0_96 = arith.constant 0 : index
    %175 = memref.load %arg3[%c2_95, %c0_96] : memref<8x8xf32, #tpu.memory_space<smem>>
    %176 = vector.broadcast %175 : f32 to vector<1x128xf32>
    %177 = arith.mulf %67, %176 : vector<1x128xf32>
    %178 = arith.addf %174, %177 : vector<1x128xf32>
    %c3_97 = arith.constant 3 : index
    %c0_98 = arith.constant 0 : index
    %179 = memref.load %arg3[%c3_97, %c0_98] : memref<8x8xf32, #tpu.memory_space<smem>>
    %180 = vector.broadcast %179 : f32 to vector<1x128xf32>
    %181 = arith.mulf %87, %180 : vector<1x128xf32>
    %182 = arith.addf %178, %181 : vector<1x128xf32>
    %c4_99 = arith.constant 4 : index
    %c0_100 = arith.constant 0 : index
    %183 = memref.load %arg3[%c4_99, %c0_100] : memref<8x8xf32, #tpu.memory_space<smem>>
    %184 = vector.broadcast %183 : f32 to vector<1x128xf32>
    %185 = arith.mulf %107, %184 : vector<1x128xf32>
    %186 = arith.addf %182, %185 : vector<1x128xf32>
    %c5_101 = arith.constant 5 : index
    %c0_102 = arith.constant 0 : index
    %187 = memref.load %arg3[%c5_101, %c0_102] : memref<8x8xf32, #tpu.memory_space<smem>>
    %188 = vector.broadcast %187 : f32 to vector<1x128xf32>
    %189 = arith.mulf %127, %188 : vector<1x128xf32>
    %190 = arith.addf %186, %189 : vector<1x128xf32>
    %c6_103 = arith.constant 6 : index
    %c0_104 = arith.constant 0 : index
    %191 = memref.load %arg3[%c6_103, %c0_104] : memref<8x8xf32, #tpu.memory_space<smem>>
    %192 = vector.broadcast %191 : f32 to vector<1x128xf32>
    %193 = arith.mulf %147, %192 : vector<1x128xf32>
    %194 = arith.addf %190, %193 : vector<1x128xf32>
    %c7_105 = arith.constant 7 : index
    %c0_106 = arith.constant 0 : index
    %195 = memref.load %arg3[%c7_105, %c0_106] : memref<8x8xf32, #tpu.memory_space<smem>>
    %196 = vector.broadcast %195 : f32 to vector<1x128xf32>
    %197 = arith.mulf %167, %196 : vector<1x128xf32>
    %198 = arith.addf %194, %197 : vector<1x128xf32>
    %c0_107 = arith.constant 0 : index
    %c0_108 = arith.constant 0 : index
    %199 = memref.load %arg4[%c0_107, %c0_108] : memref<1x8xf32, #tpu.memory_space<smem>>
    %200 = vector.broadcast %199 : f32 to vector<1x128xf32>
    %201 = arith.addf %198, %200 : vector<1x128xf32>
    %cst_109 = arith.constant 0.000000e+00 : f32
    %202 = vector.broadcast %cst_109 : f32 to vector<1x128xf32>
    %203 = arith.maximumf %201, %202 : vector<1x128xf32>
    %c0_110 = arith.constant 0 : index
    %c1_111 = arith.constant 1 : index
    %204 = memref.load %arg3[%c0_110, %c1_111] : memref<8x8xf32, #tpu.memory_space<smem>>
    %205 = vector.broadcast %204 : f32 to vector<1x128xf32>
    %206 = arith.mulf %27, %205 : vector<1x128xf32>
    %c1_112 = arith.constant 1 : index
    %c1_113 = arith.constant 1 : index
    %207 = memref.load %arg3[%c1_112, %c1_113] : memref<8x8xf32, #tpu.memory_space<smem>>
    %208 = vector.broadcast %207 : f32 to vector<1x128xf32>
    %209 = arith.mulf %47, %208 : vector<1x128xf32>
    %210 = arith.addf %206, %209 : vector<1x128xf32>
    %c2_114 = arith.constant 2 : index
    %c1_115 = arith.constant 1 : index
    %211 = memref.load %arg3[%c2_114, %c1_115] : memref<8x8xf32, #tpu.memory_space<smem>>
    %212 = vector.broadcast %211 : f32 to vector<1x128xf32>
    %213 = arith.mulf %67, %212 : vector<1x128xf32>
    %214 = arith.addf %210, %213 : vector<1x128xf32>
    %c3_116 = arith.constant 3 : index
    %c1_117 = arith.constant 1 : index
    %215 = memref.load %arg3[%c3_116, %c1_117] : memref<8x8xf32, #tpu.memory_space<smem>>
    %216 = vector.broadcast %215 : f32 to vector<1x128xf32>
    %217 = arith.mulf %87, %216 : vector<1x128xf32>
    %218 = arith.addf %214, %217 : vector<1x128xf32>
    %c4_118 = arith.constant 4 : index
    %c1_119 = arith.constant 1 : index
    %219 = memref.load %arg3[%c4_118, %c1_119] : memref<8x8xf32, #tpu.memory_space<smem>>
    %220 = vector.broadcast %219 : f32 to vector<1x128xf32>
    %221 = arith.mulf %107, %220 : vector<1x128xf32>
    %222 = arith.addf %218, %221 : vector<1x128xf32>
    %c5_120 = arith.constant 5 : index
    %c1_121 = arith.constant 1 : index
    %223 = memref.load %arg3[%c5_120, %c1_121] : memref<8x8xf32, #tpu.memory_space<smem>>
    %224 = vector.broadcast %223 : f32 to vector<1x128xf32>
    %225 = arith.mulf %127, %224 : vector<1x128xf32>
    %226 = arith.addf %222, %225 : vector<1x128xf32>
    %c6_122 = arith.constant 6 : index
    %c1_123 = arith.constant 1 : index
    %227 = memref.load %arg3[%c6_122, %c1_123] : memref<8x8xf32, #tpu.memory_space<smem>>
    %228 = vector.broadcast %227 : f32 to vector<1x128xf32>
    %229 = arith.mulf %147, %228 : vector<1x128xf32>
    %230 = arith.addf %226, %229 : vector<1x128xf32>
    %c7_124 = arith.constant 7 : index
    %c1_125 = arith.constant 1 : index
    %231 = memref.load %arg3[%c7_124, %c1_125] : memref<8x8xf32, #tpu.memory_space<smem>>
    %232 = vector.broadcast %231 : f32 to vector<1x128xf32>
    %233 = arith.mulf %167, %232 : vector<1x128xf32>
    %234 = arith.addf %230, %233 : vector<1x128xf32>
    %c0_126 = arith.constant 0 : index
    %c1_127 = arith.constant 1 : index
    %235 = memref.load %arg4[%c0_126, %c1_127] : memref<1x8xf32, #tpu.memory_space<smem>>
    %236 = vector.broadcast %235 : f32 to vector<1x128xf32>
    %237 = arith.addf %234, %236 : vector<1x128xf32>
    %cst_128 = arith.constant 0.000000e+00 : f32
    %238 = vector.broadcast %cst_128 : f32 to vector<1x128xf32>
    %239 = arith.maximumf %237, %238 : vector<1x128xf32>
    %c0_129 = arith.constant 0 : index
    %c2_130 = arith.constant 2 : index
    %240 = memref.load %arg3[%c0_129, %c2_130] : memref<8x8xf32, #tpu.memory_space<smem>>
    %241 = vector.broadcast %240 : f32 to vector<1x128xf32>
    %242 = arith.mulf %27, %241 : vector<1x128xf32>
    %c1_131 = arith.constant 1 : index
    %c2_132 = arith.constant 2 : index
    %243 = memref.load %arg3[%c1_131, %c2_132] : memref<8x8xf32, #tpu.memory_space<smem>>
    %244 = vector.broadcast %243 : f32 to vector<1x128xf32>
    %245 = arith.mulf %47, %244 : vector<1x128xf32>
    %246 = arith.addf %242, %245 : vector<1x128xf32>
    %c2_133 = arith.constant 2 : index
    %c2_134 = arith.constant 2 : index
    %247 = memref.load %arg3[%c2_133, %c2_134] : memref<8x8xf32, #tpu.memory_space<smem>>
    %248 = vector.broadcast %247 : f32 to vector<1x128xf32>
    %249 = arith.mulf %67, %248 : vector<1x128xf32>
    %250 = arith.addf %246, %249 : vector<1x128xf32>
    %c3_135 = arith.constant 3 : index
    %c2_136 = arith.constant 2 : index
    %251 = memref.load %arg3[%c3_135, %c2_136] : memref<8x8xf32, #tpu.memory_space<smem>>
    %252 = vector.broadcast %251 : f32 to vector<1x128xf32>
    %253 = arith.mulf %87, %252 : vector<1x128xf32>
    %254 = arith.addf %250, %253 : vector<1x128xf32>
    %c4_137 = arith.constant 4 : index
    %c2_138 = arith.constant 2 : index
    %255 = memref.load %arg3[%c4_137, %c2_138] : memref<8x8xf32, #tpu.memory_space<smem>>
    %256 = vector.broadcast %255 : f32 to vector<1x128xf32>
    %257 = arith.mulf %107, %256 : vector<1x128xf32>
    %258 = arith.addf %254, %257 : vector<1x128xf32>
    %c5_139 = arith.constant 5 : index
    %c2_140 = arith.constant 2 : index
    %259 = memref.load %arg3[%c5_139, %c2_140] : memref<8x8xf32, #tpu.memory_space<smem>>
    %260 = vector.broadcast %259 : f32 to vector<1x128xf32>
    %261 = arith.mulf %127, %260 : vector<1x128xf32>
    %262 = arith.addf %258, %261 : vector<1x128xf32>
    %c6_141 = arith.constant 6 : index
    %c2_142 = arith.constant 2 : index
    %263 = memref.load %arg3[%c6_141, %c2_142] : memref<8x8xf32, #tpu.memory_space<smem>>
    %264 = vector.broadcast %263 : f32 to vector<1x128xf32>
    %265 = arith.mulf %147, %264 : vector<1x128xf32>
    %266 = arith.addf %262, %265 : vector<1x128xf32>
    %c7_143 = arith.constant 7 : index
    %c2_144 = arith.constant 2 : index
    %267 = memref.load %arg3[%c7_143, %c2_144] : memref<8x8xf32, #tpu.memory_space<smem>>
    %268 = vector.broadcast %267 : f32 to vector<1x128xf32>
    %269 = arith.mulf %167, %268 : vector<1x128xf32>
    %270 = arith.addf %266, %269 : vector<1x128xf32>
    %c0_145 = arith.constant 0 : index
    %c2_146 = arith.constant 2 : index
    %271 = memref.load %arg4[%c0_145, %c2_146] : memref<1x8xf32, #tpu.memory_space<smem>>
    %272 = vector.broadcast %271 : f32 to vector<1x128xf32>
    %273 = arith.addf %270, %272 : vector<1x128xf32>
    %cst_147 = arith.constant 0.000000e+00 : f32
    %274 = vector.broadcast %cst_147 : f32 to vector<1x128xf32>
    %275 = arith.maximumf %273, %274 : vector<1x128xf32>
    %c0_148 = arith.constant 0 : index
    %c3_149 = arith.constant 3 : index
    %276 = memref.load %arg3[%c0_148, %c3_149] : memref<8x8xf32, #tpu.memory_space<smem>>
    %277 = vector.broadcast %276 : f32 to vector<1x128xf32>
    %278 = arith.mulf %27, %277 : vector<1x128xf32>
    %c1_150 = arith.constant 1 : index
    %c3_151 = arith.constant 3 : index
    %279 = memref.load %arg3[%c1_150, %c3_151] : memref<8x8xf32, #tpu.memory_space<smem>>
    %280 = vector.broadcast %279 : f32 to vector<1x128xf32>
    %281 = arith.mulf %47, %280 : vector<1x128xf32>
    %282 = arith.addf %278, %281 : vector<1x128xf32>
    %c2_152 = arith.constant 2 : index
    %c3_153 = arith.constant 3 : index
    %283 = memref.load %arg3[%c2_152, %c3_153] : memref<8x8xf32, #tpu.memory_space<smem>>
    %284 = vector.broadcast %283 : f32 to vector<1x128xf32>
    %285 = arith.mulf %67, %284 : vector<1x128xf32>
    %286 = arith.addf %282, %285 : vector<1x128xf32>
    %c3_154 = arith.constant 3 : index
    %c3_155 = arith.constant 3 : index
    %287 = memref.load %arg3[%c3_154, %c3_155] : memref<8x8xf32, #tpu.memory_space<smem>>
    %288 = vector.broadcast %287 : f32 to vector<1x128xf32>
    %289 = arith.mulf %87, %288 : vector<1x128xf32>
    %290 = arith.addf %286, %289 : vector<1x128xf32>
    %c4_156 = arith.constant 4 : index
    %c3_157 = arith.constant 3 : index
    %291 = memref.load %arg3[%c4_156, %c3_157] : memref<8x8xf32, #tpu.memory_space<smem>>
    %292 = vector.broadcast %291 : f32 to vector<1x128xf32>
    %293 = arith.mulf %107, %292 : vector<1x128xf32>
    %294 = arith.addf %290, %293 : vector<1x128xf32>
    %c5_158 = arith.constant 5 : index
    %c3_159 = arith.constant 3 : index
    %295 = memref.load %arg3[%c5_158, %c3_159] : memref<8x8xf32, #tpu.memory_space<smem>>
    %296 = vector.broadcast %295 : f32 to vector<1x128xf32>
    %297 = arith.mulf %127, %296 : vector<1x128xf32>
    %298 = arith.addf %294, %297 : vector<1x128xf32>
    %c6_160 = arith.constant 6 : index
    %c3_161 = arith.constant 3 : index
    %299 = memref.load %arg3[%c6_160, %c3_161] : memref<8x8xf32, #tpu.memory_space<smem>>
    %300 = vector.broadcast %299 : f32 to vector<1x128xf32>
    %301 = arith.mulf %147, %300 : vector<1x128xf32>
    %302 = arith.addf %298, %301 : vector<1x128xf32>
    %c7_162 = arith.constant 7 : index
    %c3_163 = arith.constant 3 : index
    %303 = memref.load %arg3[%c7_162, %c3_163] : memref<8x8xf32, #tpu.memory_space<smem>>
    %304 = vector.broadcast %303 : f32 to vector<1x128xf32>
    %305 = arith.mulf %167, %304 : vector<1x128xf32>
    %306 = arith.addf %302, %305 : vector<1x128xf32>
    %c0_164 = arith.constant 0 : index
    %c3_165 = arith.constant 3 : index
    %307 = memref.load %arg4[%c0_164, %c3_165] : memref<1x8xf32, #tpu.memory_space<smem>>
    %308 = vector.broadcast %307 : f32 to vector<1x128xf32>
    %309 = arith.addf %306, %308 : vector<1x128xf32>
    %cst_166 = arith.constant 0.000000e+00 : f32
    %310 = vector.broadcast %cst_166 : f32 to vector<1x128xf32>
    %311 = arith.maximumf %309, %310 : vector<1x128xf32>
    %c0_167 = arith.constant 0 : index
    %c4_168 = arith.constant 4 : index
    %312 = memref.load %arg3[%c0_167, %c4_168] : memref<8x8xf32, #tpu.memory_space<smem>>
    %313 = vector.broadcast %312 : f32 to vector<1x128xf32>
    %314 = arith.mulf %27, %313 : vector<1x128xf32>
    %c1_169 = arith.constant 1 : index
    %c4_170 = arith.constant 4 : index
    %315 = memref.load %arg3[%c1_169, %c4_170] : memref<8x8xf32, #tpu.memory_space<smem>>
    %316 = vector.broadcast %315 : f32 to vector<1x128xf32>
    %317 = arith.mulf %47, %316 : vector<1x128xf32>
    %318 = arith.addf %314, %317 : vector<1x128xf32>
    %c2_171 = arith.constant 2 : index
    %c4_172 = arith.constant 4 : index
    %319 = memref.load %arg3[%c2_171, %c4_172] : memref<8x8xf32, #tpu.memory_space<smem>>
    %320 = vector.broadcast %319 : f32 to vector<1x128xf32>
    %321 = arith.mulf %67, %320 : vector<1x128xf32>
    %322 = arith.addf %318, %321 : vector<1x128xf32>
    %c3_173 = arith.constant 3 : index
    %c4_174 = arith.constant 4 : index
    %323 = memref.load %arg3[%c3_173, %c4_174] : memref<8x8xf32, #tpu.memory_space<smem>>
    %324 = vector.broadcast %323 : f32 to vector<1x128xf32>
    %325 = arith.mulf %87, %324 : vector<1x128xf32>
    %326 = arith.addf %322, %325 : vector<1x128xf32>
    %c4_175 = arith.constant 4 : index
    %c4_176 = arith.constant 4 : index
    %327 = memref.load %arg3[%c4_175, %c4_176] : memref<8x8xf32, #tpu.memory_space<smem>>
    %328 = vector.broadcast %327 : f32 to vector<1x128xf32>
    %329 = arith.mulf %107, %328 : vector<1x128xf32>
    %330 = arith.addf %326, %329 : vector<1x128xf32>
    %c5_177 = arith.constant 5 : index
    %c4_178 = arith.constant 4 : index
    %331 = memref.load %arg3[%c5_177, %c4_178] : memref<8x8xf32, #tpu.memory_space<smem>>
    %332 = vector.broadcast %331 : f32 to vector<1x128xf32>
    %333 = arith.mulf %127, %332 : vector<1x128xf32>
    %334 = arith.addf %330, %333 : vector<1x128xf32>
    %c6_179 = arith.constant 6 : index
    %c4_180 = arith.constant 4 : index
    %335 = memref.load %arg3[%c6_179, %c4_180] : memref<8x8xf32, #tpu.memory_space<smem>>
    %336 = vector.broadcast %335 : f32 to vector<1x128xf32>
    %337 = arith.mulf %147, %336 : vector<1x128xf32>
    %338 = arith.addf %334, %337 : vector<1x128xf32>
    %c7_181 = arith.constant 7 : index
    %c4_182 = arith.constant 4 : index
    %339 = memref.load %arg3[%c7_181, %c4_182] : memref<8x8xf32, #tpu.memory_space<smem>>
    %340 = vector.broadcast %339 : f32 to vector<1x128xf32>
    %341 = arith.mulf %167, %340 : vector<1x128xf32>
    %342 = arith.addf %338, %341 : vector<1x128xf32>
    %c0_183 = arith.constant 0 : index
    %c4_184 = arith.constant 4 : index
    %343 = memref.load %arg4[%c0_183, %c4_184] : memref<1x8xf32, #tpu.memory_space<smem>>
    %344 = vector.broadcast %343 : f32 to vector<1x128xf32>
    %345 = arith.addf %342, %344 : vector<1x128xf32>
    %cst_185 = arith.constant 0.000000e+00 : f32
    %346 = vector.broadcast %cst_185 : f32 to vector<1x128xf32>
    %347 = arith.maximumf %345, %346 : vector<1x128xf32>
    %c0_186 = arith.constant 0 : index
    %c5_187 = arith.constant 5 : index
    %348 = memref.load %arg3[%c0_186, %c5_187] : memref<8x8xf32, #tpu.memory_space<smem>>
    %349 = vector.broadcast %348 : f32 to vector<1x128xf32>
    %350 = arith.mulf %27, %349 : vector<1x128xf32>
    %c1_188 = arith.constant 1 : index
    %c5_189 = arith.constant 5 : index
    %351 = memref.load %arg3[%c1_188, %c5_189] : memref<8x8xf32, #tpu.memory_space<smem>>
    %352 = vector.broadcast %351 : f32 to vector<1x128xf32>
    %353 = arith.mulf %47, %352 : vector<1x128xf32>
    %354 = arith.addf %350, %353 : vector<1x128xf32>
    %c2_190 = arith.constant 2 : index
    %c5_191 = arith.constant 5 : index
    %355 = memref.load %arg3[%c2_190, %c5_191] : memref<8x8xf32, #tpu.memory_space<smem>>
    %356 = vector.broadcast %355 : f32 to vector<1x128xf32>
    %357 = arith.mulf %67, %356 : vector<1x128xf32>
    %358 = arith.addf %354, %357 : vector<1x128xf32>
    %c3_192 = arith.constant 3 : index
    %c5_193 = arith.constant 5 : index
    %359 = memref.load %arg3[%c3_192, %c5_193] : memref<8x8xf32, #tpu.memory_space<smem>>
    %360 = vector.broadcast %359 : f32 to vector<1x128xf32>
    %361 = arith.mulf %87, %360 : vector<1x128xf32>
    %362 = arith.addf %358, %361 : vector<1x128xf32>
    %c4_194 = arith.constant 4 : index
    %c5_195 = arith.constant 5 : index
    %363 = memref.load %arg3[%c4_194, %c5_195] : memref<8x8xf32, #tpu.memory_space<smem>>
    %364 = vector.broadcast %363 : f32 to vector<1x128xf32>
    %365 = arith.mulf %107, %364 : vector<1x128xf32>
    %366 = arith.addf %362, %365 : vector<1x128xf32>
    %c5_196 = arith.constant 5 : index
    %c5_197 = arith.constant 5 : index
    %367 = memref.load %arg3[%c5_196, %c5_197] : memref<8x8xf32, #tpu.memory_space<smem>>
    %368 = vector.broadcast %367 : f32 to vector<1x128xf32>
    %369 = arith.mulf %127, %368 : vector<1x128xf32>
    %370 = arith.addf %366, %369 : vector<1x128xf32>
    %c6_198 = arith.constant 6 : index
    %c5_199 = arith.constant 5 : index
    %371 = memref.load %arg3[%c6_198, %c5_199] : memref<8x8xf32, #tpu.memory_space<smem>>
    %372 = vector.broadcast %371 : f32 to vector<1x128xf32>
    %373 = arith.mulf %147, %372 : vector<1x128xf32>
    %374 = arith.addf %370, %373 : vector<1x128xf32>
    %c7_200 = arith.constant 7 : index
    %c5_201 = arith.constant 5 : index
    %375 = memref.load %arg3[%c7_200, %c5_201] : memref<8x8xf32, #tpu.memory_space<smem>>
    %376 = vector.broadcast %375 : f32 to vector<1x128xf32>
    %377 = arith.mulf %167, %376 : vector<1x128xf32>
    %378 = arith.addf %374, %377 : vector<1x128xf32>
    %c0_202 = arith.constant 0 : index
    %c5_203 = arith.constant 5 : index
    %379 = memref.load %arg4[%c0_202, %c5_203] : memref<1x8xf32, #tpu.memory_space<smem>>
    %380 = vector.broadcast %379 : f32 to vector<1x128xf32>
    %381 = arith.addf %378, %380 : vector<1x128xf32>
    %cst_204 = arith.constant 0.000000e+00 : f32
    %382 = vector.broadcast %cst_204 : f32 to vector<1x128xf32>
    %383 = arith.maximumf %381, %382 : vector<1x128xf32>
    %c0_205 = arith.constant 0 : index
    %c6_206 = arith.constant 6 : index
    %384 = memref.load %arg3[%c0_205, %c6_206] : memref<8x8xf32, #tpu.memory_space<smem>>
    %385 = vector.broadcast %384 : f32 to vector<1x128xf32>
    %386 = arith.mulf %27, %385 : vector<1x128xf32>
    %c1_207 = arith.constant 1 : index
    %c6_208 = arith.constant 6 : index
    %387 = memref.load %arg3[%c1_207, %c6_208] : memref<8x8xf32, #tpu.memory_space<smem>>
    %388 = vector.broadcast %387 : f32 to vector<1x128xf32>
    %389 = arith.mulf %47, %388 : vector<1x128xf32>
    %390 = arith.addf %386, %389 : vector<1x128xf32>
    %c2_209 = arith.constant 2 : index
    %c6_210 = arith.constant 6 : index
    %391 = memref.load %arg3[%c2_209, %c6_210] : memref<8x8xf32, #tpu.memory_space<smem>>
    %392 = vector.broadcast %391 : f32 to vector<1x128xf32>
    %393 = arith.mulf %67, %392 : vector<1x128xf32>
    %394 = arith.addf %390, %393 : vector<1x128xf32>
    %c3_211 = arith.constant 3 : index
    %c6_212 = arith.constant 6 : index
    %395 = memref.load %arg3[%c3_211, %c6_212] : memref<8x8xf32, #tpu.memory_space<smem>>
    %396 = vector.broadcast %395 : f32 to vector<1x128xf32>
    %397 = arith.mulf %87, %396 : vector<1x128xf32>
    %398 = arith.addf %394, %397 : vector<1x128xf32>
    %c4_213 = arith.constant 4 : index
    %c6_214 = arith.constant 6 : index
    %399 = memref.load %arg3[%c4_213, %c6_214] : memref<8x8xf32, #tpu.memory_space<smem>>
    %400 = vector.broadcast %399 : f32 to vector<1x128xf32>
    %401 = arith.mulf %107, %400 : vector<1x128xf32>
    %402 = arith.addf %398, %401 : vector<1x128xf32>
    %c5_215 = arith.constant 5 : index
    %c6_216 = arith.constant 6 : index
    %403 = memref.load %arg3[%c5_215, %c6_216] : memref<8x8xf32, #tpu.memory_space<smem>>
    %404 = vector.broadcast %403 : f32 to vector<1x128xf32>
    %405 = arith.mulf %127, %404 : vector<1x128xf32>
    %406 = arith.addf %402, %405 : vector<1x128xf32>
    %c6_217 = arith.constant 6 : index
    %c6_218 = arith.constant 6 : index
    %407 = memref.load %arg3[%c6_217, %c6_218] : memref<8x8xf32, #tpu.memory_space<smem>>
    %408 = vector.broadcast %407 : f32 to vector<1x128xf32>
    %409 = arith.mulf %147, %408 : vector<1x128xf32>
    %410 = arith.addf %406, %409 : vector<1x128xf32>
    %c7_219 = arith.constant 7 : index
    %c6_220 = arith.constant 6 : index
    %411 = memref.load %arg3[%c7_219, %c6_220] : memref<8x8xf32, #tpu.memory_space<smem>>
    %412 = vector.broadcast %411 : f32 to vector<1x128xf32>
    %413 = arith.mulf %167, %412 : vector<1x128xf32>
    %414 = arith.addf %410, %413 : vector<1x128xf32>
    %c0_221 = arith.constant 0 : index
    %c6_222 = arith.constant 6 : index
    %415 = memref.load %arg4[%c0_221, %c6_222] : memref<1x8xf32, #tpu.memory_space<smem>>
    %416 = vector.broadcast %415 : f32 to vector<1x128xf32>
    %417 = arith.addf %414, %416 : vector<1x128xf32>
    %cst_223 = arith.constant 0.000000e+00 : f32
    %418 = vector.broadcast %cst_223 : f32 to vector<1x128xf32>
    %419 = arith.maximumf %417, %418 : vector<1x128xf32>
    %c0_224 = arith.constant 0 : index
    %c7_225 = arith.constant 7 : index
    %420 = memref.load %arg3[%c0_224, %c7_225] : memref<8x8xf32, #tpu.memory_space<smem>>
    %421 = vector.broadcast %420 : f32 to vector<1x128xf32>
    %422 = arith.mulf %27, %421 : vector<1x128xf32>
    %c1_226 = arith.constant 1 : index
    %c7_227 = arith.constant 7 : index
    %423 = memref.load %arg3[%c1_226, %c7_227] : memref<8x8xf32, #tpu.memory_space<smem>>
    %424 = vector.broadcast %423 : f32 to vector<1x128xf32>
    %425 = arith.mulf %47, %424 : vector<1x128xf32>
    %426 = arith.addf %422, %425 : vector<1x128xf32>
    %c2_228 = arith.constant 2 : index
    %c7_229 = arith.constant 7 : index
    %427 = memref.load %arg3[%c2_228, %c7_229] : memref<8x8xf32, #tpu.memory_space<smem>>
    %428 = vector.broadcast %427 : f32 to vector<1x128xf32>
    %429 = arith.mulf %67, %428 : vector<1x128xf32>
    %430 = arith.addf %426, %429 : vector<1x128xf32>
    %c3_230 = arith.constant 3 : index
    %c7_231 = arith.constant 7 : index
    %431 = memref.load %arg3[%c3_230, %c7_231] : memref<8x8xf32, #tpu.memory_space<smem>>
    %432 = vector.broadcast %431 : f32 to vector<1x128xf32>
    %433 = arith.mulf %87, %432 : vector<1x128xf32>
    %434 = arith.addf %430, %433 : vector<1x128xf32>
    %c4_232 = arith.constant 4 : index
    %c7_233 = arith.constant 7 : index
    %435 = memref.load %arg3[%c4_232, %c7_233] : memref<8x8xf32, #tpu.memory_space<smem>>
    %436 = vector.broadcast %435 : f32 to vector<1x128xf32>
    %437 = arith.mulf %107, %436 : vector<1x128xf32>
    %438 = arith.addf %434, %437 : vector<1x128xf32>
    %c5_234 = arith.constant 5 : index
    %c7_235 = arith.constant 7 : index
    %439 = memref.load %arg3[%c5_234, %c7_235] : memref<8x8xf32, #tpu.memory_space<smem>>
    %440 = vector.broadcast %439 : f32 to vector<1x128xf32>
    %441 = arith.mulf %127, %440 : vector<1x128xf32>
    %442 = arith.addf %438, %441 : vector<1x128xf32>
    %c6_236 = arith.constant 6 : index
    %c7_237 = arith.constant 7 : index
    %443 = memref.load %arg3[%c6_236, %c7_237] : memref<8x8xf32, #tpu.memory_space<smem>>
    %444 = vector.broadcast %443 : f32 to vector<1x128xf32>
    %445 = arith.mulf %147, %444 : vector<1x128xf32>
    %446 = arith.addf %442, %445 : vector<1x128xf32>
    %c7_238 = arith.constant 7 : index
    %c7_239 = arith.constant 7 : index
    %447 = memref.load %arg3[%c7_238, %c7_239] : memref<8x8xf32, #tpu.memory_space<smem>>
    %448 = vector.broadcast %447 : f32 to vector<1x128xf32>
    %449 = arith.mulf %167, %448 : vector<1x128xf32>
    %450 = arith.addf %446, %449 : vector<1x128xf32>
    %c0_240 = arith.constant 0 : index
    %c7_241 = arith.constant 7 : index
    %451 = memref.load %arg4[%c0_240, %c7_241] : memref<1x8xf32, #tpu.memory_space<smem>>
    %452 = vector.broadcast %451 : f32 to vector<1x128xf32>
    %453 = arith.addf %450, %452 : vector<1x128xf32>
    %cst_242 = arith.constant 0.000000e+00 : f32
    %454 = vector.broadcast %cst_242 : f32 to vector<1x128xf32>
    %455 = arith.maximumf %453, %454 : vector<1x128xf32>
    %c0_243 = arith.constant 0 : index
    %c0_244 = arith.constant 0 : index
    %456 = memref.load %arg5[%c0_243, %c0_244] : memref<8x8xf32, #tpu.memory_space<smem>>
    %457 = vector.broadcast %456 : f32 to vector<1x128xf32>
    %458 = arith.mulf %203, %457 : vector<1x128xf32>
    %c1_245 = arith.constant 1 : index
    %c0_246 = arith.constant 0 : index
    %459 = memref.load %arg5[%c1_245, %c0_246] : memref<8x8xf32, #tpu.memory_space<smem>>
    %460 = vector.broadcast %459 : f32 to vector<1x128xf32>
    %461 = arith.mulf %239, %460 : vector<1x128xf32>
    %462 = arith.addf %458, %461 : vector<1x128xf32>
    %c2_247 = arith.constant 2 : index
    %c0_248 = arith.constant 0 : index
    %463 = memref.load %arg5[%c2_247, %c0_248] : memref<8x8xf32, #tpu.memory_space<smem>>
    %464 = vector.broadcast %463 : f32 to vector<1x128xf32>
    %465 = arith.mulf %275, %464 : vector<1x128xf32>
    %466 = arith.addf %462, %465 : vector<1x128xf32>
    %c3_249 = arith.constant 3 : index
    %c0_250 = arith.constant 0 : index
    %467 = memref.load %arg5[%c3_249, %c0_250] : memref<8x8xf32, #tpu.memory_space<smem>>
    %468 = vector.broadcast %467 : f32 to vector<1x128xf32>
    %469 = arith.mulf %311, %468 : vector<1x128xf32>
    %470 = arith.addf %466, %469 : vector<1x128xf32>
    %c4_251 = arith.constant 4 : index
    %c0_252 = arith.constant 0 : index
    %471 = memref.load %arg5[%c4_251, %c0_252] : memref<8x8xf32, #tpu.memory_space<smem>>
    %472 = vector.broadcast %471 : f32 to vector<1x128xf32>
    %473 = arith.mulf %347, %472 : vector<1x128xf32>
    %474 = arith.addf %470, %473 : vector<1x128xf32>
    %c5_253 = arith.constant 5 : index
    %c0_254 = arith.constant 0 : index
    %475 = memref.load %arg5[%c5_253, %c0_254] : memref<8x8xf32, #tpu.memory_space<smem>>
    %476 = vector.broadcast %475 : f32 to vector<1x128xf32>
    %477 = arith.mulf %383, %476 : vector<1x128xf32>
    %478 = arith.addf %474, %477 : vector<1x128xf32>
    %c6_255 = arith.constant 6 : index
    %c0_256 = arith.constant 0 : index
    %479 = memref.load %arg5[%c6_255, %c0_256] : memref<8x8xf32, #tpu.memory_space<smem>>
    %480 = vector.broadcast %479 : f32 to vector<1x128xf32>
    %481 = arith.mulf %419, %480 : vector<1x128xf32>
    %482 = arith.addf %478, %481 : vector<1x128xf32>
    %c7_257 = arith.constant 7 : index
    %c0_258 = arith.constant 0 : index
    %483 = memref.load %arg5[%c7_257, %c0_258] : memref<8x8xf32, #tpu.memory_space<smem>>
    %484 = vector.broadcast %483 : f32 to vector<1x128xf32>
    %485 = arith.mulf %455, %484 : vector<1x128xf32>
    %486 = arith.addf %482, %485 : vector<1x128xf32>
    %c0_259 = arith.constant 0 : index
    %c0_260 = arith.constant 0 : index
    %487 = memref.load %arg6[%c0_259, %c0_260] : memref<1x8xf32, #tpu.memory_space<smem>>
    %488 = vector.broadcast %487 : f32 to vector<1x128xf32>
    %489 = arith.addf %486, %488 : vector<1x128xf32>
    %cst_261 = arith.constant 0.000000e+00 : f32
    %490 = vector.broadcast %cst_261 : f32 to vector<1x128xf32>
    %491 = arith.maximumf %489, %490 : vector<1x128xf32>
    %c0_262 = arith.constant 0 : index
    %c1_263 = arith.constant 1 : index
    %492 = memref.load %arg5[%c0_262, %c1_263] : memref<8x8xf32, #tpu.memory_space<smem>>
    %493 = vector.broadcast %492 : f32 to vector<1x128xf32>
    %494 = arith.mulf %203, %493 : vector<1x128xf32>
    %c1_264 = arith.constant 1 : index
    %c1_265 = arith.constant 1 : index
    %495 = memref.load %arg5[%c1_264, %c1_265] : memref<8x8xf32, #tpu.memory_space<smem>>
    %496 = vector.broadcast %495 : f32 to vector<1x128xf32>
    %497 = arith.mulf %239, %496 : vector<1x128xf32>
    %498 = arith.addf %494, %497 : vector<1x128xf32>
    %c2_266 = arith.constant 2 : index
    %c1_267 = arith.constant 1 : index
    %499 = memref.load %arg5[%c2_266, %c1_267] : memref<8x8xf32, #tpu.memory_space<smem>>
    %500 = vector.broadcast %499 : f32 to vector<1x128xf32>
    %501 = arith.mulf %275, %500 : vector<1x128xf32>
    %502 = arith.addf %498, %501 : vector<1x128xf32>
    %c3_268 = arith.constant 3 : index
    %c1_269 = arith.constant 1 : index
    %503 = memref.load %arg5[%c3_268, %c1_269] : memref<8x8xf32, #tpu.memory_space<smem>>
    %504 = vector.broadcast %503 : f32 to vector<1x128xf32>
    %505 = arith.mulf %311, %504 : vector<1x128xf32>
    %506 = arith.addf %502, %505 : vector<1x128xf32>
    %c4_270 = arith.constant 4 : index
    %c1_271 = arith.constant 1 : index
    %507 = memref.load %arg5[%c4_270, %c1_271] : memref<8x8xf32, #tpu.memory_space<smem>>
    %508 = vector.broadcast %507 : f32 to vector<1x128xf32>
    %509 = arith.mulf %347, %508 : vector<1x128xf32>
    %510 = arith.addf %506, %509 : vector<1x128xf32>
    %c5_272 = arith.constant 5 : index
    %c1_273 = arith.constant 1 : index
    %511 = memref.load %arg5[%c5_272, %c1_273] : memref<8x8xf32, #tpu.memory_space<smem>>
    %512 = vector.broadcast %511 : f32 to vector<1x128xf32>
    %513 = arith.mulf %383, %512 : vector<1x128xf32>
    %514 = arith.addf %510, %513 : vector<1x128xf32>
    %c6_274 = arith.constant 6 : index
    %c1_275 = arith.constant 1 : index
    %515 = memref.load %arg5[%c6_274, %c1_275] : memref<8x8xf32, #tpu.memory_space<smem>>
    %516 = vector.broadcast %515 : f32 to vector<1x128xf32>
    %517 = arith.mulf %419, %516 : vector<1x128xf32>
    %518 = arith.addf %514, %517 : vector<1x128xf32>
    %c7_276 = arith.constant 7 : index
    %c1_277 = arith.constant 1 : index
    %519 = memref.load %arg5[%c7_276, %c1_277] : memref<8x8xf32, #tpu.memory_space<smem>>
    %520 = vector.broadcast %519 : f32 to vector<1x128xf32>
    %521 = arith.mulf %455, %520 : vector<1x128xf32>
    %522 = arith.addf %518, %521 : vector<1x128xf32>
    %c0_278 = arith.constant 0 : index
    %c1_279 = arith.constant 1 : index
    %523 = memref.load %arg6[%c0_278, %c1_279] : memref<1x8xf32, #tpu.memory_space<smem>>
    %524 = vector.broadcast %523 : f32 to vector<1x128xf32>
    %525 = arith.addf %522, %524 : vector<1x128xf32>
    %cst_280 = arith.constant 0.000000e+00 : f32
    %526 = vector.broadcast %cst_280 : f32 to vector<1x128xf32>
    %527 = arith.maximumf %525, %526 : vector<1x128xf32>
    %c0_281 = arith.constant 0 : index
    %c2_282 = arith.constant 2 : index
    %528 = memref.load %arg5[%c0_281, %c2_282] : memref<8x8xf32, #tpu.memory_space<smem>>
    %529 = vector.broadcast %528 : f32 to vector<1x128xf32>
    %530 = arith.mulf %203, %529 : vector<1x128xf32>
    %c1_283 = arith.constant 1 : index
    %c2_284 = arith.constant 2 : index
    %531 = memref.load %arg5[%c1_283, %c2_284] : memref<8x8xf32, #tpu.memory_space<smem>>
    %532 = vector.broadcast %531 : f32 to vector<1x128xf32>
    %533 = arith.mulf %239, %532 : vector<1x128xf32>
    %534 = arith.addf %530, %533 : vector<1x128xf32>
    %c2_285 = arith.constant 2 : index
    %c2_286 = arith.constant 2 : index
    %535 = memref.load %arg5[%c2_285, %c2_286] : memref<8x8xf32, #tpu.memory_space<smem>>
    %536 = vector.broadcast %535 : f32 to vector<1x128xf32>
    %537 = arith.mulf %275, %536 : vector<1x128xf32>
    %538 = arith.addf %534, %537 : vector<1x128xf32>
    %c3_287 = arith.constant 3 : index
    %c2_288 = arith.constant 2 : index
    %539 = memref.load %arg5[%c3_287, %c2_288] : memref<8x8xf32, #tpu.memory_space<smem>>
    %540 = vector.broadcast %539 : f32 to vector<1x128xf32>
    %541 = arith.mulf %311, %540 : vector<1x128xf32>
    %542 = arith.addf %538, %541 : vector<1x128xf32>
    %c4_289 = arith.constant 4 : index
    %c2_290 = arith.constant 2 : index
    %543 = memref.load %arg5[%c4_289, %c2_290] : memref<8x8xf32, #tpu.memory_space<smem>>
    %544 = vector.broadcast %543 : f32 to vector<1x128xf32>
    %545 = arith.mulf %347, %544 : vector<1x128xf32>
    %546 = arith.addf %542, %545 : vector<1x128xf32>
    %c5_291 = arith.constant 5 : index
    %c2_292 = arith.constant 2 : index
    %547 = memref.load %arg5[%c5_291, %c2_292] : memref<8x8xf32, #tpu.memory_space<smem>>
    %548 = vector.broadcast %547 : f32 to vector<1x128xf32>
    %549 = arith.mulf %383, %548 : vector<1x128xf32>
    %550 = arith.addf %546, %549 : vector<1x128xf32>
    %c6_293 = arith.constant 6 : index
    %c2_294 = arith.constant 2 : index
    %551 = memref.load %arg5[%c6_293, %c2_294] : memref<8x8xf32, #tpu.memory_space<smem>>
    %552 = vector.broadcast %551 : f32 to vector<1x128xf32>
    %553 = arith.mulf %419, %552 : vector<1x128xf32>
    %554 = arith.addf %550, %553 : vector<1x128xf32>
    %c7_295 = arith.constant 7 : index
    %c2_296 = arith.constant 2 : index
    %555 = memref.load %arg5[%c7_295, %c2_296] : memref<8x8xf32, #tpu.memory_space<smem>>
    %556 = vector.broadcast %555 : f32 to vector<1x128xf32>
    %557 = arith.mulf %455, %556 : vector<1x128xf32>
    %558 = arith.addf %554, %557 : vector<1x128xf32>
    %c0_297 = arith.constant 0 : index
    %c2_298 = arith.constant 2 : index
    %559 = memref.load %arg6[%c0_297, %c2_298] : memref<1x8xf32, #tpu.memory_space<smem>>
    %560 = vector.broadcast %559 : f32 to vector<1x128xf32>
    %561 = arith.addf %558, %560 : vector<1x128xf32>
    %cst_299 = arith.constant 0.000000e+00 : f32
    %562 = vector.broadcast %cst_299 : f32 to vector<1x128xf32>
    %563 = arith.maximumf %561, %562 : vector<1x128xf32>
    %c0_300 = arith.constant 0 : index
    %c3_301 = arith.constant 3 : index
    %564 = memref.load %arg5[%c0_300, %c3_301] : memref<8x8xf32, #tpu.memory_space<smem>>
    %565 = vector.broadcast %564 : f32 to vector<1x128xf32>
    %566 = arith.mulf %203, %565 : vector<1x128xf32>
    %c1_302 = arith.constant 1 : index
    %c3_303 = arith.constant 3 : index
    %567 = memref.load %arg5[%c1_302, %c3_303] : memref<8x8xf32, #tpu.memory_space<smem>>
    %568 = vector.broadcast %567 : f32 to vector<1x128xf32>
    %569 = arith.mulf %239, %568 : vector<1x128xf32>
    %570 = arith.addf %566, %569 : vector<1x128xf32>
    %c2_304 = arith.constant 2 : index
    %c3_305 = arith.constant 3 : index
    %571 = memref.load %arg5[%c2_304, %c3_305] : memref<8x8xf32, #tpu.memory_space<smem>>
    %572 = vector.broadcast %571 : f32 to vector<1x128xf32>
    %573 = arith.mulf %275, %572 : vector<1x128xf32>
    %574 = arith.addf %570, %573 : vector<1x128xf32>
    %c3_306 = arith.constant 3 : index
    %c3_307 = arith.constant 3 : index
    %575 = memref.load %arg5[%c3_306, %c3_307] : memref<8x8xf32, #tpu.memory_space<smem>>
    %576 = vector.broadcast %575 : f32 to vector<1x128xf32>
    %577 = arith.mulf %311, %576 : vector<1x128xf32>
    %578 = arith.addf %574, %577 : vector<1x128xf32>
    %c4_308 = arith.constant 4 : index
    %c3_309 = arith.constant 3 : index
    %579 = memref.load %arg5[%c4_308, %c3_309] : memref<8x8xf32, #tpu.memory_space<smem>>
    %580 = vector.broadcast %579 : f32 to vector<1x128xf32>
    %581 = arith.mulf %347, %580 : vector<1x128xf32>
    %582 = arith.addf %578, %581 : vector<1x128xf32>
    %c5_310 = arith.constant 5 : index
    %c3_311 = arith.constant 3 : index
    %583 = memref.load %arg5[%c5_310, %c3_311] : memref<8x8xf32, #tpu.memory_space<smem>>
    %584 = vector.broadcast %583 : f32 to vector<1x128xf32>
    %585 = arith.mulf %383, %584 : vector<1x128xf32>
    %586 = arith.addf %582, %585 : vector<1x128xf32>
    %c6_312 = arith.constant 6 : index
    %c3_313 = arith.constant 3 : index
    %587 = memref.load %arg5[%c6_312, %c3_313] : memref<8x8xf32, #tpu.memory_space<smem>>
    %588 = vector.broadcast %587 : f32 to vector<1x128xf32>
    %589 = arith.mulf %419, %588 : vector<1x128xf32>
    %590 = arith.addf %586, %589 : vector<1x128xf32>
    %c7_314 = arith.constant 7 : index
    %c3_315 = arith.constant 3 : index
    %591 = memref.load %arg5[%c7_314, %c3_315] : memref<8x8xf32, #tpu.memory_space<smem>>
    %592 = vector.broadcast %591 : f32 to vector<1x128xf32>
    %593 = arith.mulf %455, %592 : vector<1x128xf32>
    %594 = arith.addf %590, %593 : vector<1x128xf32>
    %c0_316 = arith.constant 0 : index
    %c3_317 = arith.constant 3 : index
    %595 = memref.load %arg6[%c0_316, %c3_317] : memref<1x8xf32, #tpu.memory_space<smem>>
    %596 = vector.broadcast %595 : f32 to vector<1x128xf32>
    %597 = arith.addf %594, %596 : vector<1x128xf32>
    %cst_318 = arith.constant 0.000000e+00 : f32
    %598 = vector.broadcast %cst_318 : f32 to vector<1x128xf32>
    %599 = arith.maximumf %597, %598 : vector<1x128xf32>
    %c0_319 = arith.constant 0 : index
    %c4_320 = arith.constant 4 : index
    %600 = memref.load %arg5[%c0_319, %c4_320] : memref<8x8xf32, #tpu.memory_space<smem>>
    %601 = vector.broadcast %600 : f32 to vector<1x128xf32>
    %602 = arith.mulf %203, %601 : vector<1x128xf32>
    %c1_321 = arith.constant 1 : index
    %c4_322 = arith.constant 4 : index
    %603 = memref.load %arg5[%c1_321, %c4_322] : memref<8x8xf32, #tpu.memory_space<smem>>
    %604 = vector.broadcast %603 : f32 to vector<1x128xf32>
    %605 = arith.mulf %239, %604 : vector<1x128xf32>
    %606 = arith.addf %602, %605 : vector<1x128xf32>
    %c2_323 = arith.constant 2 : index
    %c4_324 = arith.constant 4 : index
    %607 = memref.load %arg5[%c2_323, %c4_324] : memref<8x8xf32, #tpu.memory_space<smem>>
    %608 = vector.broadcast %607 : f32 to vector<1x128xf32>
    %609 = arith.mulf %275, %608 : vector<1x128xf32>
    %610 = arith.addf %606, %609 : vector<1x128xf32>
    %c3_325 = arith.constant 3 : index
    %c4_326 = arith.constant 4 : index
    %611 = memref.load %arg5[%c3_325, %c4_326] : memref<8x8xf32, #tpu.memory_space<smem>>
    %612 = vector.broadcast %611 : f32 to vector<1x128xf32>
    %613 = arith.mulf %311, %612 : vector<1x128xf32>
    %614 = arith.addf %610, %613 : vector<1x128xf32>
    %c4_327 = arith.constant 4 : index
    %c4_328 = arith.constant 4 : index
    %615 = memref.load %arg5[%c4_327, %c4_328] : memref<8x8xf32, #tpu.memory_space<smem>>
    %616 = vector.broadcast %615 : f32 to vector<1x128xf32>
    %617 = arith.mulf %347, %616 : vector<1x128xf32>
    %618 = arith.addf %614, %617 : vector<1x128xf32>
    %c5_329 = arith.constant 5 : index
    %c4_330 = arith.constant 4 : index
    %619 = memref.load %arg5[%c5_329, %c4_330] : memref<8x8xf32, #tpu.memory_space<smem>>
    %620 = vector.broadcast %619 : f32 to vector<1x128xf32>
    %621 = arith.mulf %383, %620 : vector<1x128xf32>
    %622 = arith.addf %618, %621 : vector<1x128xf32>
    %c6_331 = arith.constant 6 : index
    %c4_332 = arith.constant 4 : index
    %623 = memref.load %arg5[%c6_331, %c4_332] : memref<8x8xf32, #tpu.memory_space<smem>>
    %624 = vector.broadcast %623 : f32 to vector<1x128xf32>
    %625 = arith.mulf %419, %624 : vector<1x128xf32>
    %626 = arith.addf %622, %625 : vector<1x128xf32>
    %c7_333 = arith.constant 7 : index
    %c4_334 = arith.constant 4 : index
    %627 = memref.load %arg5[%c7_333, %c4_334] : memref<8x8xf32, #tpu.memory_space<smem>>
    %628 = vector.broadcast %627 : f32 to vector<1x128xf32>
    %629 = arith.mulf %455, %628 : vector<1x128xf32>
    %630 = arith.addf %626, %629 : vector<1x128xf32>
    %c0_335 = arith.constant 0 : index
    %c4_336 = arith.constant 4 : index
    %631 = memref.load %arg6[%c0_335, %c4_336] : memref<1x8xf32, #tpu.memory_space<smem>>
    %632 = vector.broadcast %631 : f32 to vector<1x128xf32>
    %633 = arith.addf %630, %632 : vector<1x128xf32>
    %cst_337 = arith.constant 0.000000e+00 : f32
    %634 = vector.broadcast %cst_337 : f32 to vector<1x128xf32>
    %635 = arith.maximumf %633, %634 : vector<1x128xf32>
    %c0_338 = arith.constant 0 : index
    %c5_339 = arith.constant 5 : index
    %636 = memref.load %arg5[%c0_338, %c5_339] : memref<8x8xf32, #tpu.memory_space<smem>>
    %637 = vector.broadcast %636 : f32 to vector<1x128xf32>
    %638 = arith.mulf %203, %637 : vector<1x128xf32>
    %c1_340 = arith.constant 1 : index
    %c5_341 = arith.constant 5 : index
    %639 = memref.load %arg5[%c1_340, %c5_341] : memref<8x8xf32, #tpu.memory_space<smem>>
    %640 = vector.broadcast %639 : f32 to vector<1x128xf32>
    %641 = arith.mulf %239, %640 : vector<1x128xf32>
    %642 = arith.addf %638, %641 : vector<1x128xf32>
    %c2_342 = arith.constant 2 : index
    %c5_343 = arith.constant 5 : index
    %643 = memref.load %arg5[%c2_342, %c5_343] : memref<8x8xf32, #tpu.memory_space<smem>>
    %644 = vector.broadcast %643 : f32 to vector<1x128xf32>
    %645 = arith.mulf %275, %644 : vector<1x128xf32>
    %646 = arith.addf %642, %645 : vector<1x128xf32>
    %c3_344 = arith.constant 3 : index
    %c5_345 = arith.constant 5 : index
    %647 = memref.load %arg5[%c3_344, %c5_345] : memref<8x8xf32, #tpu.memory_space<smem>>
    %648 = vector.broadcast %647 : f32 to vector<1x128xf32>
    %649 = arith.mulf %311, %648 : vector<1x128xf32>
    %650 = arith.addf %646, %649 : vector<1x128xf32>
    %c4_346 = arith.constant 4 : index
    %c5_347 = arith.constant 5 : index
    %651 = memref.load %arg5[%c4_346, %c5_347] : memref<8x8xf32, #tpu.memory_space<smem>>
    %652 = vector.broadcast %651 : f32 to vector<1x128xf32>
    %653 = arith.mulf %347, %652 : vector<1x128xf32>
    %654 = arith.addf %650, %653 : vector<1x128xf32>
    %c5_348 = arith.constant 5 : index
    %c5_349 = arith.constant 5 : index
    %655 = memref.load %arg5[%c5_348, %c5_349] : memref<8x8xf32, #tpu.memory_space<smem>>
    %656 = vector.broadcast %655 : f32 to vector<1x128xf32>
    %657 = arith.mulf %383, %656 : vector<1x128xf32>
    %658 = arith.addf %654, %657 : vector<1x128xf32>
    %c6_350 = arith.constant 6 : index
    %c5_351 = arith.constant 5 : index
    %659 = memref.load %arg5[%c6_350, %c5_351] : memref<8x8xf32, #tpu.memory_space<smem>>
    %660 = vector.broadcast %659 : f32 to vector<1x128xf32>
    %661 = arith.mulf %419, %660 : vector<1x128xf32>
    %662 = arith.addf %658, %661 : vector<1x128xf32>
    %c7_352 = arith.constant 7 : index
    %c5_353 = arith.constant 5 : index
    %663 = memref.load %arg5[%c7_352, %c5_353] : memref<8x8xf32, #tpu.memory_space<smem>>
    %664 = vector.broadcast %663 : f32 to vector<1x128xf32>
    %665 = arith.mulf %455, %664 : vector<1x128xf32>
    %666 = arith.addf %662, %665 : vector<1x128xf32>
    %c0_354 = arith.constant 0 : index
    %c5_355 = arith.constant 5 : index
    %667 = memref.load %arg6[%c0_354, %c5_355] : memref<1x8xf32, #tpu.memory_space<smem>>
    %668 = vector.broadcast %667 : f32 to vector<1x128xf32>
    %669 = arith.addf %666, %668 : vector<1x128xf32>
    %cst_356 = arith.constant 0.000000e+00 : f32
    %670 = vector.broadcast %cst_356 : f32 to vector<1x128xf32>
    %671 = arith.maximumf %669, %670 : vector<1x128xf32>
    %c0_357 = arith.constant 0 : index
    %c6_358 = arith.constant 6 : index
    %672 = memref.load %arg5[%c0_357, %c6_358] : memref<8x8xf32, #tpu.memory_space<smem>>
    %673 = vector.broadcast %672 : f32 to vector<1x128xf32>
    %674 = arith.mulf %203, %673 : vector<1x128xf32>
    %c1_359 = arith.constant 1 : index
    %c6_360 = arith.constant 6 : index
    %675 = memref.load %arg5[%c1_359, %c6_360] : memref<8x8xf32, #tpu.memory_space<smem>>
    %676 = vector.broadcast %675 : f32 to vector<1x128xf32>
    %677 = arith.mulf %239, %676 : vector<1x128xf32>
    %678 = arith.addf %674, %677 : vector<1x128xf32>
    %c2_361 = arith.constant 2 : index
    %c6_362 = arith.constant 6 : index
    %679 = memref.load %arg5[%c2_361, %c6_362] : memref<8x8xf32, #tpu.memory_space<smem>>
    %680 = vector.broadcast %679 : f32 to vector<1x128xf32>
    %681 = arith.mulf %275, %680 : vector<1x128xf32>
    %682 = arith.addf %678, %681 : vector<1x128xf32>
    %c3_363 = arith.constant 3 : index
    %c6_364 = arith.constant 6 : index
    %683 = memref.load %arg5[%c3_363, %c6_364] : memref<8x8xf32, #tpu.memory_space<smem>>
    %684 = vector.broadcast %683 : f32 to vector<1x128xf32>
    %685 = arith.mulf %311, %684 : vector<1x128xf32>
    %686 = arith.addf %682, %685 : vector<1x128xf32>
    %c4_365 = arith.constant 4 : index
    %c6_366 = arith.constant 6 : index
    %687 = memref.load %arg5[%c4_365, %c6_366] : memref<8x8xf32, #tpu.memory_space<smem>>
    %688 = vector.broadcast %687 : f32 to vector<1x128xf32>
    %689 = arith.mulf %347, %688 : vector<1x128xf32>
    %690 = arith.addf %686, %689 : vector<1x128xf32>
    %c5_367 = arith.constant 5 : index
    %c6_368 = arith.constant 6 : index
    %691 = memref.load %arg5[%c5_367, %c6_368] : memref<8x8xf32, #tpu.memory_space<smem>>
    %692 = vector.broadcast %691 : f32 to vector<1x128xf32>
    %693 = arith.mulf %383, %692 : vector<1x128xf32>
    %694 = arith.addf %690, %693 : vector<1x128xf32>
    %c6_369 = arith.constant 6 : index
    %c6_370 = arith.constant 6 : index
    %695 = memref.load %arg5[%c6_369, %c6_370] : memref<8x8xf32, #tpu.memory_space<smem>>
    %696 = vector.broadcast %695 : f32 to vector<1x128xf32>
    %697 = arith.mulf %419, %696 : vector<1x128xf32>
    %698 = arith.addf %694, %697 : vector<1x128xf32>
    %c7_371 = arith.constant 7 : index
    %c6_372 = arith.constant 6 : index
    %699 = memref.load %arg5[%c7_371, %c6_372] : memref<8x8xf32, #tpu.memory_space<smem>>
    %700 = vector.broadcast %699 : f32 to vector<1x128xf32>
    %701 = arith.mulf %455, %700 : vector<1x128xf32>
    %702 = arith.addf %698, %701 : vector<1x128xf32>
    %c0_373 = arith.constant 0 : index
    %c6_374 = arith.constant 6 : index
    %703 = memref.load %arg6[%c0_373, %c6_374] : memref<1x8xf32, #tpu.memory_space<smem>>
    %704 = vector.broadcast %703 : f32 to vector<1x128xf32>
    %705 = arith.addf %702, %704 : vector<1x128xf32>
    %cst_375 = arith.constant 0.000000e+00 : f32
    %706 = vector.broadcast %cst_375 : f32 to vector<1x128xf32>
    %707 = arith.maximumf %705, %706 : vector<1x128xf32>
    %c0_376 = arith.constant 0 : index
    %c7_377 = arith.constant 7 : index
    %708 = memref.load %arg5[%c0_376, %c7_377] : memref<8x8xf32, #tpu.memory_space<smem>>
    %709 = vector.broadcast %708 : f32 to vector<1x128xf32>
    %710 = arith.mulf %203, %709 : vector<1x128xf32>
    %c1_378 = arith.constant 1 : index
    %c7_379 = arith.constant 7 : index
    %711 = memref.load %arg5[%c1_378, %c7_379] : memref<8x8xf32, #tpu.memory_space<smem>>
    %712 = vector.broadcast %711 : f32 to vector<1x128xf32>
    %713 = arith.mulf %239, %712 : vector<1x128xf32>
    %714 = arith.addf %710, %713 : vector<1x128xf32>
    %c2_380 = arith.constant 2 : index
    %c7_381 = arith.constant 7 : index
    %715 = memref.load %arg5[%c2_380, %c7_381] : memref<8x8xf32, #tpu.memory_space<smem>>
    %716 = vector.broadcast %715 : f32 to vector<1x128xf32>
    %717 = arith.mulf %275, %716 : vector<1x128xf32>
    %718 = arith.addf %714, %717 : vector<1x128xf32>
    %c3_382 = arith.constant 3 : index
    %c7_383 = arith.constant 7 : index
    %719 = memref.load %arg5[%c3_382, %c7_383] : memref<8x8xf32, #tpu.memory_space<smem>>
    %720 = vector.broadcast %719 : f32 to vector<1x128xf32>
    %721 = arith.mulf %311, %720 : vector<1x128xf32>
    %722 = arith.addf %718, %721 : vector<1x128xf32>
    %c4_384 = arith.constant 4 : index
    %c7_385 = arith.constant 7 : index
    %723 = memref.load %arg5[%c4_384, %c7_385] : memref<8x8xf32, #tpu.memory_space<smem>>
    %724 = vector.broadcast %723 : f32 to vector<1x128xf32>
    %725 = arith.mulf %347, %724 : vector<1x128xf32>
    %726 = arith.addf %722, %725 : vector<1x128xf32>
    %c5_386 = arith.constant 5 : index
    %c7_387 = arith.constant 7 : index
    %727 = memref.load %arg5[%c5_386, %c7_387] : memref<8x8xf32, #tpu.memory_space<smem>>
    %728 = vector.broadcast %727 : f32 to vector<1x128xf32>
    %729 = arith.mulf %383, %728 : vector<1x128xf32>
    %730 = arith.addf %726, %729 : vector<1x128xf32>
    %c6_388 = arith.constant 6 : index
    %c7_389 = arith.constant 7 : index
    %731 = memref.load %arg5[%c6_388, %c7_389] : memref<8x8xf32, #tpu.memory_space<smem>>
    %732 = vector.broadcast %731 : f32 to vector<1x128xf32>
    %733 = arith.mulf %419, %732 : vector<1x128xf32>
    %734 = arith.addf %730, %733 : vector<1x128xf32>
    %c7_390 = arith.constant 7 : index
    %c7_391 = arith.constant 7 : index
    %735 = memref.load %arg5[%c7_390, %c7_391] : memref<8x8xf32, #tpu.memory_space<smem>>
    %736 = vector.broadcast %735 : f32 to vector<1x128xf32>
    %737 = arith.mulf %455, %736 : vector<1x128xf32>
    %738 = arith.addf %734, %737 : vector<1x128xf32>
    %c0_392 = arith.constant 0 : index
    %c7_393 = arith.constant 7 : index
    %739 = memref.load %arg6[%c0_392, %c7_393] : memref<1x8xf32, #tpu.memory_space<smem>>
    %740 = vector.broadcast %739 : f32 to vector<1x128xf32>
    %741 = arith.addf %738, %740 : vector<1x128xf32>
    %cst_394 = arith.constant 0.000000e+00 : f32
    %742 = vector.broadcast %cst_394 : f32 to vector<1x128xf32>
    %743 = arith.maximumf %741, %742 : vector<1x128xf32>
    %c0_395 = arith.constant 0 : index
    %c0_396 = arith.constant 0 : index
    %744 = memref.load %arg7[%c0_395, %c0_396] : memref<8x3xf32, #tpu.memory_space<smem>>
    %745 = vector.broadcast %744 : f32 to vector<1x128xf32>
    %746 = arith.mulf %491, %745 : vector<1x128xf32>
    %c1_397 = arith.constant 1 : index
    %c0_398 = arith.constant 0 : index
    %747 = memref.load %arg7[%c1_397, %c0_398] : memref<8x3xf32, #tpu.memory_space<smem>>
    %748 = vector.broadcast %747 : f32 to vector<1x128xf32>
    %749 = arith.mulf %527, %748 : vector<1x128xf32>
    %750 = arith.addf %746, %749 : vector<1x128xf32>
    %c2_399 = arith.constant 2 : index
    %c0_400 = arith.constant 0 : index
    %751 = memref.load %arg7[%c2_399, %c0_400] : memref<8x3xf32, #tpu.memory_space<smem>>
    %752 = vector.broadcast %751 : f32 to vector<1x128xf32>
    %753 = arith.mulf %563, %752 : vector<1x128xf32>
    %754 = arith.addf %750, %753 : vector<1x128xf32>
    %c3_401 = arith.constant 3 : index
    %c0_402 = arith.constant 0 : index
    %755 = memref.load %arg7[%c3_401, %c0_402] : memref<8x3xf32, #tpu.memory_space<smem>>
    %756 = vector.broadcast %755 : f32 to vector<1x128xf32>
    %757 = arith.mulf %599, %756 : vector<1x128xf32>
    %758 = arith.addf %754, %757 : vector<1x128xf32>
    %c4_403 = arith.constant 4 : index
    %c0_404 = arith.constant 0 : index
    %759 = memref.load %arg7[%c4_403, %c0_404] : memref<8x3xf32, #tpu.memory_space<smem>>
    %760 = vector.broadcast %759 : f32 to vector<1x128xf32>
    %761 = arith.mulf %635, %760 : vector<1x128xf32>
    %762 = arith.addf %758, %761 : vector<1x128xf32>
    %c5_405 = arith.constant 5 : index
    %c0_406 = arith.constant 0 : index
    %763 = memref.load %arg7[%c5_405, %c0_406] : memref<8x3xf32, #tpu.memory_space<smem>>
    %764 = vector.broadcast %763 : f32 to vector<1x128xf32>
    %765 = arith.mulf %671, %764 : vector<1x128xf32>
    %766 = arith.addf %762, %765 : vector<1x128xf32>
    %c6_407 = arith.constant 6 : index
    %c0_408 = arith.constant 0 : index
    %767 = memref.load %arg7[%c6_407, %c0_408] : memref<8x3xf32, #tpu.memory_space<smem>>
    %768 = vector.broadcast %767 : f32 to vector<1x128xf32>
    %769 = arith.mulf %707, %768 : vector<1x128xf32>
    %770 = arith.addf %766, %769 : vector<1x128xf32>
    %c7_409 = arith.constant 7 : index
    %c0_410 = arith.constant 0 : index
    %771 = memref.load %arg7[%c7_409, %c0_410] : memref<8x3xf32, #tpu.memory_space<smem>>
    %772 = vector.broadcast %771 : f32 to vector<1x128xf32>
    %773 = arith.mulf %743, %772 : vector<1x128xf32>
    %774 = arith.addf %770, %773 : vector<1x128xf32>
    %c0_411 = arith.constant 0 : index
    %c0_412 = arith.constant 0 : index
    %775 = memref.load %arg8[%c0_411, %c0_412] : memref<1x3xf32, #tpu.memory_space<smem>>
    %776 = vector.broadcast %775 : f32 to vector<1x128xf32>
    %777 = arith.addf %774, %776 : vector<1x128xf32>
    %c0_413 = arith.constant 0 : index
    %c1_414 = arith.constant 1 : index
    %778 = memref.load %arg7[%c0_413, %c1_414] : memref<8x3xf32, #tpu.memory_space<smem>>
    %779 = vector.broadcast %778 : f32 to vector<1x128xf32>
    %780 = arith.mulf %491, %779 : vector<1x128xf32>
    %c1_415 = arith.constant 1 : index
    %c1_416 = arith.constant 1 : index
    %781 = memref.load %arg7[%c1_415, %c1_416] : memref<8x3xf32, #tpu.memory_space<smem>>
    %782 = vector.broadcast %781 : f32 to vector<1x128xf32>
    %783 = arith.mulf %527, %782 : vector<1x128xf32>
    %784 = arith.addf %780, %783 : vector<1x128xf32>
    %c2_417 = arith.constant 2 : index
    %c1_418 = arith.constant 1 : index
    %785 = memref.load %arg7[%c2_417, %c1_418] : memref<8x3xf32, #tpu.memory_space<smem>>
    %786 = vector.broadcast %785 : f32 to vector<1x128xf32>
    %787 = arith.mulf %563, %786 : vector<1x128xf32>
    %788 = arith.addf %784, %787 : vector<1x128xf32>
    %c3_419 = arith.constant 3 : index
    %c1_420 = arith.constant 1 : index
    %789 = memref.load %arg7[%c3_419, %c1_420] : memref<8x3xf32, #tpu.memory_space<smem>>
    %790 = vector.broadcast %789 : f32 to vector<1x128xf32>
    %791 = arith.mulf %599, %790 : vector<1x128xf32>
    %792 = arith.addf %788, %791 : vector<1x128xf32>
    %c4_421 = arith.constant 4 : index
    %c1_422 = arith.constant 1 : index
    %793 = memref.load %arg7[%c4_421, %c1_422] : memref<8x3xf32, #tpu.memory_space<smem>>
    %794 = vector.broadcast %793 : f32 to vector<1x128xf32>
    %795 = arith.mulf %635, %794 : vector<1x128xf32>
    %796 = arith.addf %792, %795 : vector<1x128xf32>
    %c5_423 = arith.constant 5 : index
    %c1_424 = arith.constant 1 : index
    %797 = memref.load %arg7[%c5_423, %c1_424] : memref<8x3xf32, #tpu.memory_space<smem>>
    %798 = vector.broadcast %797 : f32 to vector<1x128xf32>
    %799 = arith.mulf %671, %798 : vector<1x128xf32>
    %800 = arith.addf %796, %799 : vector<1x128xf32>
    %c6_425 = arith.constant 6 : index
    %c1_426 = arith.constant 1 : index
    %801 = memref.load %arg7[%c6_425, %c1_426] : memref<8x3xf32, #tpu.memory_space<smem>>
    %802 = vector.broadcast %801 : f32 to vector<1x128xf32>
    %803 = arith.mulf %707, %802 : vector<1x128xf32>
    %804 = arith.addf %800, %803 : vector<1x128xf32>
    %c7_427 = arith.constant 7 : index
    %c1_428 = arith.constant 1 : index
    %805 = memref.load %arg7[%c7_427, %c1_428] : memref<8x3xf32, #tpu.memory_space<smem>>
    %806 = vector.broadcast %805 : f32 to vector<1x128xf32>
    %807 = arith.mulf %743, %806 : vector<1x128xf32>
    %808 = arith.addf %804, %807 : vector<1x128xf32>
    %c0_429 = arith.constant 0 : index
    %c1_430 = arith.constant 1 : index
    %809 = memref.load %arg8[%c0_429, %c1_430] : memref<1x3xf32, #tpu.memory_space<smem>>
    %810 = vector.broadcast %809 : f32 to vector<1x128xf32>
    %811 = arith.addf %808, %810 : vector<1x128xf32>
    %c0_431 = arith.constant 0 : index
    %c2_432 = arith.constant 2 : index
    %812 = memref.load %arg7[%c0_431, %c2_432] : memref<8x3xf32, #tpu.memory_space<smem>>
    %813 = vector.broadcast %812 : f32 to vector<1x128xf32>
    %814 = arith.mulf %491, %813 : vector<1x128xf32>
    %c1_433 = arith.constant 1 : index
    %c2_434 = arith.constant 2 : index
    %815 = memref.load %arg7[%c1_433, %c2_434] : memref<8x3xf32, #tpu.memory_space<smem>>
    %816 = vector.broadcast %815 : f32 to vector<1x128xf32>
    %817 = arith.mulf %527, %816 : vector<1x128xf32>
    %818 = arith.addf %814, %817 : vector<1x128xf32>
    %c2_435 = arith.constant 2 : index
    %c2_436 = arith.constant 2 : index
    %819 = memref.load %arg7[%c2_435, %c2_436] : memref<8x3xf32, #tpu.memory_space<smem>>
    %820 = vector.broadcast %819 : f32 to vector<1x128xf32>
    %821 = arith.mulf %563, %820 : vector<1x128xf32>
    %822 = arith.addf %818, %821 : vector<1x128xf32>
    %c3_437 = arith.constant 3 : index
    %c2_438 = arith.constant 2 : index
    %823 = memref.load %arg7[%c3_437, %c2_438] : memref<8x3xf32, #tpu.memory_space<smem>>
    %824 = vector.broadcast %823 : f32 to vector<1x128xf32>
    %825 = arith.mulf %599, %824 : vector<1x128xf32>
    %826 = arith.addf %822, %825 : vector<1x128xf32>
    %c4_439 = arith.constant 4 : index
    %c2_440 = arith.constant 2 : index
    %827 = memref.load %arg7[%c4_439, %c2_440] : memref<8x3xf32, #tpu.memory_space<smem>>
    %828 = vector.broadcast %827 : f32 to vector<1x128xf32>
    %829 = arith.mulf %635, %828 : vector<1x128xf32>
    %830 = arith.addf %826, %829 : vector<1x128xf32>
    %c5_441 = arith.constant 5 : index
    %c2_442 = arith.constant 2 : index
    %831 = memref.load %arg7[%c5_441, %c2_442] : memref<8x3xf32, #tpu.memory_space<smem>>
    %832 = vector.broadcast %831 : f32 to vector<1x128xf32>
    %833 = arith.mulf %671, %832 : vector<1x128xf32>
    %834 = arith.addf %830, %833 : vector<1x128xf32>
    %c6_443 = arith.constant 6 : index
    %c2_444 = arith.constant 2 : index
    %835 = memref.load %arg7[%c6_443, %c2_444] : memref<8x3xf32, #tpu.memory_space<smem>>
    %836 = vector.broadcast %835 : f32 to vector<1x128xf32>
    %837 = arith.mulf %707, %836 : vector<1x128xf32>
    %838 = arith.addf %834, %837 : vector<1x128xf32>
    %c7_445 = arith.constant 7 : index
    %c2_446 = arith.constant 2 : index
    %839 = memref.load %arg7[%c7_445, %c2_446] : memref<8x3xf32, #tpu.memory_space<smem>>
    %840 = vector.broadcast %839 : f32 to vector<1x128xf32>
    %841 = arith.mulf %743, %840 : vector<1x128xf32>
    %842 = arith.addf %838, %841 : vector<1x128xf32>
    %c0_447 = arith.constant 0 : index
    %c2_448 = arith.constant 2 : index
    %843 = memref.load %arg8[%c0_447, %c2_448] : memref<1x3xf32, #tpu.memory_space<smem>>
    %844 = vector.broadcast %843 : f32 to vector<1x128xf32>
    %845 = arith.addf %842, %844 : vector<1x128xf32>
    %c0_449 = arith.constant 0 : index
    %c0_450 = arith.constant 0 : index
    %c0_451 = arith.constant 0 : index
    %846 = vector.load %arg10[%c0_449, %c0_450, %c0_451] : memref<3x1x128xf32, #tpu.memory_space<vmem>>, vector<1x1x128xf32>
    %847 = vector.shape_cast %846 : vector<1x1x128xf32> to vector<1x128xf32>
    %848 = vector.shape_cast %777 : vector<1x128xf32> to vector<1x1x128xf32>
    tpu.vector_store %arg10[%c0_449, %c0_450, %c0_451], %848 {strides = array<i32>} : memref<3x1x128xf32, #tpu.memory_space<vmem>>, vector<1x1x128xf32>,
    %c1_452 = arith.constant 1 : index
    %c0_453 = arith.constant 0 : index
    %c0_454 = arith.constant 0 : index
    %849 = vector.load %arg10[%c1_452, %c0_453, %c0_454] : memref<3x1x128xf32, #tpu.memory_space<vmem>>, vector<1x1x128xf32>
    %850 = vector.shape_cast %849 : vector<1x1x128xf32> to vector<1x128xf32>
    %851 = vector.shape_cast %811 : vector<1x128xf32> to vector<1x1x128xf32>
    tpu.vector_store %arg10[%c1_452, %c0_453, %c0_454], %851 {strides = array<i32>} : memref<3x1x128xf32, #tpu.memory_space<vmem>>, vector<1x1x128xf32>,
    %c2_455 = arith.constant 2 : index
    %c0_456 = arith.constant 0 : index
    %c0_457 = arith.constant 0 : index
    %852 = vector.load %arg10[%c2_455, %c0_456, %c0_457] : memref<3x1x128xf32, #tpu.memory_space<vmem>>, vector<1x1x128xf32>
    %853 = vector.shape_cast %852 : vector<1x1x128xf32> to vector<1x128xf32>
    %854 = vector.shape_cast %845 : vector<1x128xf32> to vector<1x1x128xf32>
    tpu.vector_store %arg10[%c2_455, %c0_456, %c0_457], %854 {strides = array<i32>} : memref<3x1x128xf32, #tpu.memory_space<vmem>>, vector<1x1x128xf32>,
    return
  }
  func.func @transform_0(%arg0: i32) -> (i32, i32) {
    %c0_i32 = arith.constant 0 : i32
    %c0_i32_0 = arith.constant 0 : i32
    %c0_i32_1 = arith.constant 0 : i32
    return %c0_i32, %c0_i32_0 : i32, i32
  }
  func.func @transform_1(%arg0: i32) -> (i32, i32) {
    %c0_i32 = arith.constant 0 : i32
    %c0_i32_0 = arith.constant 0 : i32
    %c0_i32_1 = arith.constant 0 : i32
    return %c0_i32, %c0_i32_0 : i32, i32
  }
  func.func @transform_2(%arg0: i32) -> (i32, i32) {
    %c0_i32 = arith.constant 0 : i32
    %c0_i32_0 = arith.constant 0 : i32
    %c0_i32_1 = arith.constant 0 : i32
    return %c0_i32, %c0_i32_0 : i32, i32
  }
  func.func @transform_3(%arg0: i32) -> (i32, i32) {
    %c0_i32 = arith.constant 0 : i32
    %c0_i32_0 = arith.constant 0 : i32
    %c0_i32_1 = arith.constant 0 : i32
    return %c0_i32, %c0_i32_0 : i32, i32
  }
  func.func @transform_4(%arg0: i32) -> (i32, i32) {
    %c0_i32 = arith.constant 0 : i32
    %c0_i32_0 = arith.constant 0 : i32
    %c0_i32_1 = arith.constant 0 : i32
    return %c0_i32, %c0_i32_0 : i32, i32
  }
  func.func @transform_5(%arg0: i32) -> (i32, i32) {
    %c0_i32 = arith.constant 0 : i32
    %c0_i32_0 = arith.constant 0 : i32
    %c0_i32_1 = arith.constant 0 : i32
    return %c0_i32, %c0_i32_0 : i32, i32
  }
  func.func @transform_6(%arg0: i32) -> (i32, i32) {
    %c0_i32 = arith.constant 0 : i32
    %c0_i32_0 = arith.constant 0 : i32
    %c0_i32_1 = arith.constant 0 : i32
    return %c0_i32, %c0_i32_0 : i32, i32
  }
  func.func @transform_7(%arg0: i32) -> (i32, i32) {
    %c0_i32 = arith.constant 0 : i32
    %c0_i32_0 = arith.constant 0 : i32
    %c0_i32_1 = arith.constant 0 : i32
    return %c0_i32, %c0_i32_0 : i32, i32
  }
  func.func @transform_8(%arg0: i32) -> (i32, i32, i32) {
    %c0_i32 = arith.constant 0 : i32
    %c0_i32_0 = arith.constant 0 : i32
    %c0_i32_1 = arith.constant 0 : i32
    return %c0_i32, %arg0, %c0_i32_0 : i32, i32, i32
  }
  func.func @transform_9(%arg0: i32) -> (i32, i32, i32) {
    %c0_i32 = arith.constant 0 : i32
    %c0_i32_0 = arith.constant 0 : i32
    %c0_i32_1 = arith.constant 0 : i32
    return %c0_i32, %arg0, %c0_i32_0 : i32, i32, i32
  }
}

</mosaic_0001>

<llo_original>
// kernel: tpu_custom_call.1
$region0: #{tpu_custom_call.1}
  #allocation0 [shape = 'u32[]', space=smem, size = 0x4, offset = 0x4, fixed_abs, tag = 'smem constant byte address 0x4 - core index']
  #allocation1 [shape = 'u32[144,128]{1,0:T(1,128)}', space=vmem, size = 0x12000, scoped, tag = 'internal scratch']
  %s0 = inlined_call_operand.hbm [shape: f32[4,8], index: 0, kind: input, shape index: {}]
  %s1 = inlined_call_operand.vmem [shape: f32[1,8], index: 1, kind: input, shape index: {}]
  %s2 = inlined_call_operand.vmem [shape: f32[8,8], index: 2, kind: input, shape index: {}]
  %s3 = inlined_call_operand.vmem [shape: f32[1,8], index: 3, kind: input, shape index: {}]
  %s4 = inlined_call_operand.vmem [shape: f32[8,8], index: 4, kind: input, shape index: {}]
  %s5 = inlined_call_operand.vmem [shape: f32[1,8], index: 5, kind: input, shape index: {}]
  %s6 = inlined_call_operand.vmem [shape: f32[8,3], index: 6, kind: input, shape index: {}]
  %s7 = inlined_call_operand.vmem [shape: f32[1,3], index: 7, kind: input, shape index: {}]
  %s8 = inlined_call_operand.vmem [shape: f32[4,1,128], index: 8, kind: input, shape index: {}]
  %s9 = inlined_call_operand.hbm [shape: f32[3,1,128], index: 9, kind: output, shape index: {}]
  %s10 = sld [smem:[#allocation0]]
  $region78: #{tpu_custom_call.1} parent=0
    _
  %s12 = ssub.s32 1, %s10
  %s13 = scalar_select 0, %s12, %s10
  $region1: #{tpu_custom_call.1} parent=0
    #allocation2 [shape = 'u8[2048]{0}', space=smem, size = 0x800, scoped, tag = 'input window, operand 0, single buffered']
    #allocation3 [shape = 's32[1]{0}', space=sflag, size = 0x4, scoped, tag = 'scoped memory for tpu_custom_call.1']
    #allocation4 [shape = 's32[1]{0}', space=sflag, size = 0x4, scoped, tag = 'scoped memory for tpu_custom_call.1']
    #allocation5 [shape = 's32[1]{0}', space=sflag, size = 0x4, scoped, tag = 'scoped memory for tpu_custom_call.1']
    #allocation6 [shape = 'u8[512]{0}', space=smem, size = 0x200, scoped, tag = 'input window, operand 1, single buffered']
    #allocation7 [shape = 'u8[4096]{0}', space=smem, size = 0x1000, scoped, tag = 'input window, operand 2, single buffered']
    #allocation8 [shape = 's32[1]{0}', space=sflag, size = 0x4, scoped, tag = 'scoped memory for tpu_custom_call.1']
    #allocation9 [shape = 'u8[512]{0}', space=smem, size = 0x200, scoped, tag = 'input window, operand 3, single buffered']
    #allocation10 [shape = 'u8[4096]{0}', space=smem, size = 0x1000, scoped, tag = 'input window, operand 4, single buffered']
    #allocation11 [shape = 's32[1]{0}', space=sflag, size = 0x4, scoped, tag = 'scoped memory for tpu_custom_call.1']
    #allocation12 [shape = 'u8[512]{0}', space=smem, size = 0x200, scoped, tag = 'input window, operand 5, single buffered']
    #allocation13 [shape = 'u8[4096]{0}', space=smem, size = 0x1000, scoped, tag = 'input window, operand 6, single buffered']
    #allocation14 [shape = 's32[1]{0}', space=sflag, size = 0x4, scoped, tag = 'scoped memory for tpu_custom_call.1']
    #allocation15 [shape = 'u8[512]{0}', space=smem, size = 0x200, scoped, tag = 'input window, operand 7, single buffered']
    #allocation16 [shape = 'u8[1536]{0}', space=vmem, size = 0x800, scoped, tag = 'output window, operand 0, single buffered']
    %14 = vsyncpa [#allocation4], 0
    %15 = vsyncpa [#allocation5], 0
    %16 = vsyncpa [#allocation8], 0
    %17 = vsyncpa [#allocation11], 0
    %18 = vsyncpa [#allocation14], 0
    %19 = vsyncpa [#allocation3], 0
    // Predicated region
    $region2: #{tpu_custom_call.1} parent=1 // pred_check
      _
    $region3: #{tpu_custom_call.1} parent=1 // pred_check_branch
      %21 = sbr.rel (0) target = $region5
    $region4: #{tpu_custom_call.1} parent=1 // pred_region
      %s23 = ssub.s32 64, 64
      %24 = vsyncadd [#allocation4], %s23
      %27 = dma.hbm_to_smem %s0, 64, [#allocation2], [#allocation4]
    $region5: #{tpu_custom_call.1} parent=1 // pred_fallthru
      _
    // Predicated region
    $region6: #{tpu_custom_call.1} parent=1 // pred_check
      _
    $region7: #{tpu_custom_call.1} parent=1 // pred_check_branch
      %29 = sbr.rel (0) target = $region9
    $region8: #{tpu_custom_call.1} parent=1 // pred_region
      %s31 = ssub.s32 16, 16
      %32 = vsyncadd [#allocation5], %s31
      %s34 = sshll.u32 %s1, 4
      %s35 = int_to_ptr.vmem [resolvable:$true] %s34
      %37 = dma.vmem_to_smem %s35, 16, [#allocation6], [#allocation5]
    $region9: #{tpu_custom_call.1} parent=1 // pred_fallthru
      _
    // Predicated region
    $region10: #{tpu_custom_call.1} parent=1 // pred_check
      _
    $region11: #{tpu_custom_call.1} parent=1 // pred_check_branch
      %39 = sbr.rel (0) target = $region13
    $region12: #{tpu_custom_call.1} parent=1 // pred_region
      %s41 = ssub.s32 128, 128
      %42 = vsyncadd [#allocation8], %s41
      %s44 = sshll.u32 %s2, 4
      %s45 = int_to_ptr.vmem [resolvable:$true] %s44
      %47 = dma.vmem_to_smem %s45, 128, [#allocation7], [#allocation8]
    $region13: #{tpu_custom_call.1} parent=1 // pred_fallthru
      _
    // Predicated region
    $region14: #{tpu_custom_call.1} parent=1 // pred_check
      _
    $region15: #{tpu_custom_call.1} parent=1 // pred_check_branch
      %49 = sbr.rel (0) target = $region17
    $region16: #{tpu_custom_call.1} parent=1 // pred_region
      %s51 = ssub.s32 16, 16
      %52 = vsyncadd [#allocation8], %s51
      %s54 = sshll.u32 %s3, 4
      %s55 = int_to_ptr.vmem [resolvable:$true] %s54
      %57 = dma.vmem_to_smem %s55, 16, [#allocation9], [#allocation8]
    $region17: #{tpu_custom_call.1} parent=1 // pred_fallthru
      _
    // Predicated region
    $region18: #{tpu_custom_call.1} parent=1 // pred_check
      _
    $region19: #{tpu_custom_call.1} parent=1 // pred_check_branch
      %59 = sbr.rel (0) target = $region21
    $region20: #{tpu_custom_call.1} parent=1 // pred_region
      %s61 = ssub.s32 128, 128
      %62 = vsyncadd [#allocation11], %s61
      %s64 = sshll.u32 %s4, 4
      %s65 = int_to_ptr.vmem [resolvable:$true] %s64
      %67 = dma.vmem_to_smem %s65, 128, [#allocation10], [#allocation11]
    $region21: #{tpu_custom_call.1} parent=1 // pred_fallthru
      _
    // Predicated region
    $region22: #{tpu_custom_call.1} parent=1 // pred_check
      _
    $region23: #{tpu_custom_call.1} parent=1 // pred_check_branch
      %69 = sbr.rel (0) target = $region25
    $region24: #{tpu_custom_call.1} parent=1 // pred_region
      %s71 = ssub.s32 16, 16
      %72 = vsyncadd [#allocation11], %s71
      %s74 = sshll.u32 %s5, 4
      %s75 = int_to_ptr.vmem [resolvable:$true] %s74
      %77 = dma.vmem_to_smem %s75, 16, [#allocation12], [#allocation11]
    $region25: #{tpu_custom_call.1} parent=1 // pred_fallthru
      _
    // Predicated region
    $region26: #{tpu_custom_call.1} parent=1 // pred_check
      _
    $region27: #{tpu_custom_call.1} parent=1 // pred_check_branch
      %79 = sbr.rel (0) target = $region29
    $region28: #{tpu_custom_call.1} parent=1 // pred_region
      %s81 = ssub.s32 128, 128
      %82 = vsyncadd [#allocation14], %s81
      %s84 = sshll.u32 %s6, 4
      %s85 = int_to_ptr.vmem [resolvable:$true] %s84
      %87 = dma.vmem_to_smem %s85, 128, [#allocation13], [#allocation14]
    $region29: #{tpu_custom_call.1} parent=1 // pred_fallthru
      _
    // Predicated region
    $region30: #{tpu_custom_call.1} parent=1 // pred_check
      _
    $region31: #{tpu_custom_call.1} parent=1 // pred_check_branch
      %89 = sbr.rel (0) target = $region33
    $region32: #{tpu_custom_call.1} parent=1 // pred_region
      %s91 = ssub.s32 16, 16
      %92 = vsyncadd [#allocation14], %s91
      %s94 = sshll.u32 %s7, 4
      %s95 = int_to_ptr.vmem [resolvable:$true] %s94
      %97 = dma.vmem_to_smem %s95, 16, [#allocation15], [#allocation14]
    $region33: #{tpu_custom_call.1} parent=1 // pred_fallthru
      _
    // Predicated region
    $region34: #{tpu_custom_call.1} parent=1 // pred_check
      _
    $region35: #{tpu_custom_call.1} parent=1 // pred_check_branch
      %99 = sbr.rel (0) target = $region37
    $region36: #{tpu_custom_call.1} parent=1 // pred_region
      _
    $region37: #{tpu_custom_call.1} parent=1 // pred_fallthru
      _
    // Predicated region
    $region38: #{tpu_custom_call.1} parent=1 // pred_check
      _
    $region39: #{tpu_custom_call.1} parent=1 // pred_check_branch
      %101 = sbr.rel (0) target = $region41
    $region40: #{tpu_custom_call.1} parent=1 // pred_region
      %102 = dma.done [#allocation4], 64
    $region41: #{tpu_custom_call.1} parent=1 // pred_fallthru
      _
    // Predicated region
    $region42: #{tpu_custom_call.1} parent=1 // pred_check
      _
    $region43: #{tpu_custom_call.1} parent=1 // pred_check_branch
      %104 = sbr.rel (0) target = $region45
    $region44: #{tpu_custom_call.1} parent=1 // pred_region
      %105 = dma.done [#allocation5], 16
    $region45: #{tpu_custom_call.1} parent=1 // pred_fallthru
      _
    // Predicated region
    $region46: #{tpu_custom_call.1} parent=1 // pred_check
      _
    $region47: #{tpu_custom_call.1} parent=1 // pred_check_branch
      %107 = sbr.rel (0) target = $region49
    $region48: #{tpu_custom_call.1} parent=1 // pred_region
      %108 = dma.done [#allocation8], 128
    $region49: #{tpu_custom_call.1} parent=1 // pred_fallthru
      _
    // Predicated region
    $region50: #{tpu_custom_call.1} parent=1 // pred_check
      _
    $region51: #{tpu_custom_call.1} parent=1 // pred_check_branch
      %110 = sbr.rel (0) target = $region53
    $region52: #{tpu_custom_call.1} parent=1 // pred_region
      %111 = dma.done [#allocation8], 16
    $region53: #{tpu_custom_call.1} parent=1 // pred_fallthru
      _
    // Predicated region
    $region54: #{tpu_custom_call.1} parent=1 // pred_check
      _
    $region55: #{tpu_custom_call.1} parent=1 // pred_check_branch
      %113 = sbr.rel (0) target = $region57
    $region56: #{tpu_custom_call.1} parent=1 // pred_region
      %114 = dma.done [#allocation11], 128
    $region57: #{tpu_custom_call.1} parent=1 // pred_fallthru
      _
    // Predicated region
    $region58: #{tpu_custom_call.1} parent=1 // pred_check
      _
    $region59: #{tpu_custom_call.1} parent=1 // pred_check_branch
      %116 = sbr.rel (0) target = $region61
    $region60: #{tpu_custom_call.1} parent=1 // pred_region
      %117 = dma.done [#allocation11], 16
    $region61: #{tpu_custom_call.1} parent=1 // pred_fallthru
      _
    // Predicated region
    $region62: #{tpu_custom_call.1} parent=1 // pred_check
      _
    $region63: #{tpu_custom_call.1} parent=1 // pred_check_branch
      %119 = sbr.rel (0) target = $region65
    $region64: #{tpu_custom_call.1} parent=1 // pred_region
      %120 = dma.done [#allocation14], 128
    $region65: #{tpu_custom_call.1} parent=1 // pred_fallthru
      _
    // Predicated region
    $region66: #{tpu_custom_call.1} parent=1 // pred_check
      _
    $region67: #{tpu_custom_call.1} parent=1 // pred_check_branch
      %122 = sbr.rel (0) target = $region69
    $region68: #{tpu_custom_call.1} parent=1 // pred_region
      %123 = dma.done [#allocation14], 16
    $region69: #{tpu_custom_call.1} parent=1 // pred_fallthru
      _
    %124 = sfence
    %v125 = vld [vmem:[%s8] sm:$0x1]
    %s126 = scalar_lea.vmem %s8, 1
    %v127 = vld [vmem:[%s126] sm:$0x1]
    %s128 = scalar_lea.vmem %s8, 2
    %v129 = vld [vmem:[%s128] sm:$0x1]
    %s130 = scalar_lea.vmem %s8, 3
    %v131 = vld [vmem:[%s130] sm:$0x1]
    %s132 = sld [smem:[#allocation2]]
    %v133 = vstv %s132
    %v134 = vmul.f32 %v125, %v133
    %s135 = sld [smem:[#allocation2 + $0x80]]
    %v136 = vstv %s135
    %v137 = vmul.f32 %v127, %v136
    %v138 = vadd.f32 %v134, %v137
    %s139 = sld [smem:[#allocation2 + $0x100]]
    %v140 = vstv %s139
    %v141 = vmul.f32 %v129, %v140
    %v142 = vadd.f32 %v138, %v141
    %s143 = sld [smem:[#allocation2 + $0x180]]
    %v144 = vstv %s143
    %v145 = vmul.f32 %v131, %v144
    %v146 = vadd.f32 %v142, %v145
    %s147 = sld [smem:[#allocation6]]
    %v148 = vstv %s147
    %v149 = vadd.f32 %v146, %v148
    %v150 = vmax.f32 %v149, 0.0
    %s151 = sld [smem:[#allocation2 + $0x1]]
    %v152 = vstv %s151
    %v153 = vmul.f32 %v125, %v152
    %s154 = sld [smem:[#allocation2 + $0x81]]
    %v155 = vstv %s154
    %v156 = vmul.f32 %v127, %v155
    %v157 = vadd.f32 %v153, %v156
    %s158 = sld [smem:[#allocation2 + $0x101]]
    %v159 = vstv %s158
    %v160 = vmul.f32 %v129, %v159
    %v161 = vadd.f32 %v157, %v160
    %s162 = sld [smem:[#allocation2 + $0x181]]
    %v163 = vstv %s162
    %v164 = vmul.f32 %v131, %v163
    %v165 = vadd.f32 %v161, %v164
    %s166 = sld [smem:[#allocation6 + $0x1]]
    %v167 = vstv %s166
    %v168 = vadd.f32 %v165, %v167
    %v169 = vmax.f32 %v168, 0.0
    %s170 = sld [smem:[#allocation2 + $0x2]]
    %v171 = vstv %s170
    %v172 = vmul.f32 %v125, %v171
    %s173 = sld [smem:[#allocation2 + $0x82]]
    %v174 = vstv %s173
    %v175 = vmul.f32 %v127, %v174
    %v176 = vadd.f32 %v172, %v175
    %s177 = sld [smem:[#allocation2 + $0x102]]
    %v178 = vstv %s177
    %v179 = vmul.f32 %v129, %v178
    %v180 = vadd.f32 %v176, %v179
    %s181 = sld [smem:[#allocation2 + $0x182]]
    %v182 = vstv %s181
    %v183 = vmul.f32 %v131, %v182
    %v184 = vadd.f32 %v180, %v183
    %s185 = sld [smem:[#allocation6 + $0x2]]
    %v186 = vstv %s185
    %v187 = vadd.f32 %v184, %v186
    %v188 = vmax.f32 %v187, 0.0
    %s189 = sld [smem:[#allocation2 + $0x3]]
    %v190 = vstv %s189
    %v191 = vmul.f32 %v125, %v190
    %s192 = sld [smem:[#allocation2 + $0x83]]
    %v193 = vstv %s192
    %v194 = vmul.f32 %v127, %v193
    %v195 = vadd.f32 %v191, %v194
    %s196 = sld [smem:[#allocation2 + $0x103]]
    %v197 = vstv %s196
    %v198 = vmul.f32 %v129, %v197
    %v199 = vadd.f32 %v195, %v198
    %s200 = sld [smem:[#allocation2 + $0x183]]
    %v201 = vstv %s200
    %v202 = vmul.f32 %v131, %v201
    %v203 = vadd.f32 %v199, %v202
    %s204 = sld [smem:[#allocation6 + $0x3]]
    %v205 = vstv %s204
    %v206 = vadd.f32 %v203, %v205
    %v207 = vmax.f32 %v206, 0.0
    %s208 = sld [smem:[#allocation2 + $0x4]]
    %v209 = vstv %s208
    %v210 = vmul.f32 %v125, %v209
    %s211 = sld [smem:[#allocation2 + $0x84]]
    %v212 = vstv %s211
    %v213 = vmul.f32 %v127, %v212
    %v214 = vadd.f32 %v210, %v213
    %s215 = sld [smem:[#allocation2 + $0x104]]
    %v216 = vstv %s215
    %v217 = vmul.f32 %v129, %v216
    %v218 = vadd.f32 %v214, %v217
    %s219 = sld [smem:[#allocation2 + $0x184]]
    %v220 = vstv %s219
    %v221 = vmul.f32 %v131, %v220
    %v222 = vadd.f32 %v218, %v221
    %s223 = sld [smem:[#allocation6 + $0x4]]
    %v224 = vstv %s223
    %v225 = vadd.f32 %v222, %v224
    %v226 = vmax.f32 %v225, 0.0
    %s227 = sld [smem:[#allocation2 + $0x5]]
    %v228 = vstv %s227
    %v229 = vmul.f32 %v125, %v228
    %s230 = sld [smem:[#allocation2 + $0x85]]
    %v231 = vstv %s230
    %v232 = vmul.f32 %v127, %v231
    %v233 = vadd.f32 %v229, %v232
    %s234 = sld [smem:[#allocation2 + $0x105]]
    %v235 = vstv %s234
    %v236 = vmul.f32 %v129, %v235
    %v237 = vadd.f32 %v233, %v236
    %s238 = sld [smem:[#allocation2 + $0x185]]
    %v239 = vstv %s238
    %v240 = vmul.f32 %v131, %v239
    %v241 = vadd.f32 %v237, %v240
    %s242 = sld [smem:[#allocation6 + $0x5]]
    %v243 = vstv %s242
    %v244 = vadd.f32 %v241, %v243
    %v245 = vmax.f32 %v244, 0.0
    %s246 = sld [smem:[#allocation2 + $0x6]]
    %v247 = vstv %s246
    %v248 = vmul.f32 %v125, %v247
    %s249 = sld [smem:[#allocation2 + $0x86]]
    %v250 = vstv %s249
    %v251 = vmul.f32 %v127, %v250
    %v252 = vadd.f32 %v248, %v251
    %s253 = sld [smem:[#allocation2 + $0x106]]
    %v254 = vstv %s253
    %v255 = vmul.f32 %v129, %v254
    %v256 = vadd.f32 %v252, %v255
    %s257 = sld [smem:[#allocation2 + $0x186]]
    %v258 = vstv %s257
    %v259 = vmul.f32 %v131, %v258
    %v260 = vadd.f32 %v256, %v259
    %s261 = sld [smem:[#allocation6 + $0x6]]
    %v262 = vstv %s261
    %v263 = vadd.f32 %v260, %v262
    %v264 = vmax.f32 %v263, 0.0
    %s265 = sld [smem:[#allocation2 + $0x7]]
    %v266 = vstv %s265
    %v267 = vmul.f32 %v125, %v266
    %s268 = sld [smem:[#allocation2 + $0x87]]
    %v269 = vstv %s268
    %v270 = vmul.f32 %v127, %v269
    %v271 = vadd.f32 %v267, %v270
    %s272 = sld [smem:[#allocation2 + $0x107]]
    %v273 = vstv %s272
    %v274 = vmul.f32 %v129, %v273
    %v275 = vadd.f32 %v271, %v274
    %s276 = sld [smem:[#allocation2 + $0x187]]
    %v277 = vstv %s276
    %v278 = vmul.f32 %v131, %v277
    %v279 = vadd.f32 %v275, %v278
    %s280 = sld [smem:[#allocation6 + $0x7]]
    %v281 = vstv %s280
    %v282 = vadd.f32 %v279, %v281
    %v283 = vmax.f32 %v282, 0.0
    %s284 = sld [smem:[#allocation7]]
    %v285 = vstv %s284
    %v286 = vmul.f32 %v150, %v285
    %s287 = sld [smem:[#allocation7 + $0x80]]
    %v288 = vstv %s287
    %v289 = vmul.f32 %v169, %v288
    %v290 = vadd.f32 %v286, %v289
    %s291 = sld [smem:[#allocation7 + $0x100]]
    %v292 = vstv %s291
    %v293 = vmul.f32 %v188, %v292
    %v294 = vadd.f32 %v290, %v293
    %s295 = sld [smem:[#allocation7 + $0x180]]
    %v296 = vstv %s295
    %v297 = vmul.f32 %v207, %v296
    %v298 = vadd.f32 %v294, %v297
    %s299 = sld [smem:[#allocation7 + $0x200]]
    %v300 = vstv %s299
    %v301 = vmul.f32 %v226, %v300
    %v302 = vadd.f32 %v298, %v301
    %s303 = sld [smem:[#allocation7 + $0x280]]
    %v304 = vstv %s303
    %v305 = vmul.f32 %v245, %v304
    %v306 = vadd.f32 %v302, %v305
    %s307 = sld [smem:[#allocation7 + $0x300]]
    %v308 = vstv %s307
    %v309 = vmul.f32 %v264, %v308
    %v310 = vadd.f32 %v306, %v309
    %s311 = sld [smem:[#allocation7 + $0x380]]
    %v312 = vstv %s311
    %v313 = vmul.f32 %v283, %v312
    %v314 = vadd.f32 %v310, %v313
    %s315 = sld [smem:[#allocation9]]
    %v316 = vstv %s315
    %v317 = vadd.f32 %v314, %v316
    %v318 = vmax.f32 %v317, 0.0
    %s319 = sld [smem:[#allocation7 + $0x1]]
    %v320 = vstv %s319
    %v321 = vmul.f32 %v150, %v320
    %s322 = sld [smem:[#allocation7 + $0x81]]
    %v323 = vstv %s322
    %v324 = vmul.f32 %v169, %v323
    %v325 = vadd.f32 %v321, %v324
    %s326 = sld [smem:[#allocation7 + $0x101]]
    %v327 = vstv %s326
    %v328 = vmul.f32 %v188, %v327
    %v329 = vadd.f32 %v325, %v328
    %s330 = sld [smem:[#allocation7 + $0x181]]
    %v331 = vstv %s330
    %v332 = vmul.f32 %v207, %v331
    %v333 = vadd.f32 %v329, %v332
    %s334 = sld [smem:[#allocation7 + $0x201]]
    %v335 = vstv %s334
    %v336 = vmul.f32 %v226, %v335
    %v337 = vadd.f32 %v333, %v336
    %s338 = sld [smem:[#allocation7 + $0x281]]
    %v339 = vstv %s338
    %v340 = vmul.f32 %v245, %v339
    %v341 = vadd.f32 %v337, %v340
    %s342 = sld [smem:[#allocation7 + $0x301]]
    %v343 = vstv %s342
    %v344 = vmul.f32 %v264, %v343
    %v345 = vadd.f32 %v341, %v344
    %s346 = sld [smem:[#allocation7 + $0x381]]
    %v347 = vstv %s346
    %v348 = vmul.f32 %v283, %v347
    %v349 = vadd.f32 %v345, %v348
    %s350 = sld [smem:[#allocation9 + $0x1]]
    %v351 = vstv %s350
    %v352 = vadd.f32 %v349, %v351
    %v353 = vmax.f32 %v352, 0.0
    %s354 = sld [smem:[#allocation7 + $0x2]]
    %v355 = vstv %s354
    %v356 = vmul.f32 %v150, %v355
    %s357 = sld [smem:[#allocation7 + $0x82]]
    %v358 = vstv %s357
    %v359 = vmul.f32 %v169, %v358
    %v360 = vadd.f32 %v356, %v359
    %s361 = sld [smem:[#allocation7 + $0x102]]
    %v362 = vstv %s361
    %v363 = vmul.f32 %v188, %v362
    %v364 = vadd.f32 %v360, %v363
    %s365 = sld [smem:[#allocation7 + $0x182]]
    %v366 = vstv %s365
    %v367 = vmul.f32 %v207, %v366
    %v368 = vadd.f32 %v364, %v367
    %s369 = sld [smem:[#allocation7 + $0x202]]
    %v370 = vstv %s369
    %v371 = vmul.f32 %v226, %v370
    %v372 = vadd.f32 %v368, %v371
    %s373 = sld [smem:[#allocation7 + $0x282]]
    %v374 = vstv %s373
    %v375 = vmul.f32 %v245, %v374
    %v376 = vadd.f32 %v372, %v375
    %s377 = sld [smem:[#allocation7 + $0x302]]
    %v378 = vstv %s377
    %v379 = vmul.f32 %v264, %v378
    %v380 = vadd.f32 %v376, %v379
    %s381 = sld [smem:[#allocation7 + $0x382]]
    %v382 = vstv %s381
    %v383 = vmul.f32 %v283, %v382
    %v384 = vadd.f32 %v380, %v383
    %s385 = sld [smem:[#allocation9 + $0x2]]
    %v386 = vstv %s385
    %v387 = vadd.f32 %v384, %v386
    %v388 = vmax.f32 %v387, 0.0
    %s389 = sld [smem:[#allocation7 + $0x3]]
    %v390 = vstv %s389
    %v391 = vmul.f32 %v150, %v390
    %s392 = sld [smem:[#allocation7 + $0x83]]
    %v393 = vstv %s392
    %v394 = vmul.f32 %v169, %v393
    %v395 = vadd.f32 %v391, %v394
    %s396 = sld [smem:[#allocation7 + $0x103]]
    %v397 = vstv %s396
    %v398 = vmul.f32 %v188, %v397
    %v399 = vadd.f32 %v395, %v398
    %s400 = sld [smem:[#allocation7 + $0x183]]
    %v401 = vstv %s400
    %v402 = vmul.f32 %v207, %v401
    %v403 = vadd.f32 %v399, %v402
    %s404 = sld [smem:[#allocation7 + $0x203]]
    %v405 = vstv %s404
    %v406 = vmul.f32 %v226, %v405
    %v407 = vadd.f32 %v403, %v406
    %s408 = sld [smem:[#allocation7 + $0x283]]
    %v409 = vstv %s408
    %v410 = vmul.f32 %v245, %v409
    %v411 = vadd.f32 %v407, %v410
    %s412 = sld [smem:[#allocation7 + $0x303]]
    %v413 = vstv %s412
    %v414 = vmul.f32 %v264, %v413
    %v415 = vadd.f32 %v411, %v414
    %s416 = sld [smem:[#allocation7 + $0x383]]
    %v417 = vstv %s416
    %v418 = vmul.f32 %v283, %v417
    %v419 = vadd.f32 %v415, %v418
    %s420 = sld [smem:[#allocation9 + $0x3]]
    %v421 = vstv %s420
    %v422 = vadd.f32 %v419, %v421
    %v423 = vmax.f32 %v422, 0.0
    %s424 = sld [smem:[#allocation7 + $0x4]]
    %v425 = vstv %s424
    %v426 = vmul.f32 %v150, %v425
    %s427 = sld [smem:[#allocation7 + $0x84]]
    %v428 = vstv %s427
    %v429 = vmul.f32 %v169, %v428
    %v430 = vadd.f32 %v426, %v429
    %s431 = sld [smem:[#allocation7 + $0x104]]
    %v432 = vstv %s431
    %v433 = vmul.f32 %v188, %v432
    %v434 = vadd.f32 %v430, %v433
    %s435 = sld [smem:[#allocation7 + $0x184]]
    %v436 = vstv %s435
    %v437 = vmul.f32 %v207, %v436
    %v438 = vadd.f32 %v434, %v437
    %s439 = sld [smem:[#allocation7 + $0x204]]
    %v440 = vstv %s439
    %v441 = vmul.f32 %v226, %v440
    %v442 = vadd.f32 %v438, %v441
    %s443 = sld [smem:[#allocation7 + $0x284]]
    %v444 = vstv %s443
    %v445 = vmul.f32 %v245, %v444
    %v446 = vadd.f32 %v442, %v445
    %s447 = sld [smem:[#allocation7 + $0x304]]
    %v448 = vstv %s447
    %v449 = vmul.f32 %v264, %v448
    %v450 = vadd.f32 %v446, %v449
    %s451 = sld [smem:[#allocation7 + $0x384]]
    %v452 = vstv %s451
    %v453 = vmul.f32 %v283, %v452
    %v454 = vadd.f32 %v450, %v453
    %s455 = sld [smem:[#allocation9 + $0x4]]
    %v456 = vstv %s455
    %v457 = vadd.f32 %v454, %v456
    %v458 = vmax.f32 %v457, 0.0
    %s459 = sld [smem:[#allocation7 + $0x5]]
    %v460 = vstv %s459
    %v461 = vmul.f32 %v150, %v460
    %s462 = sld [smem:[#allocation7 + $0x85]]
    %v463 = vstv %s462
    %v464 = vmul.f32 %v169, %v463
    %v465 = vadd.f32 %v461, %v464
    %s466 = sld [smem:[#allocation7 + $0x105]]
    %v467 = vstv %s466
    %v468 = vmul.f32 %v188, %v467
    %v469 = vadd.f32 %v465, %v468
    %s470 = sld [smem:[#allocation7 + $0x185]]
    %v471 = vstv %s470
    %v472 = vmul.f32 %v207, %v471
    %v473 = vadd.f32 %v469, %v472
    %s474 = sld [smem:[#allocation7 + $0x205]]
    %v475 = vstv %s474
    %v476 = vmul.f32 %v226, %v475
    %v477 = vadd.f32 %v473, %v476
    %s478 = sld [smem:[#allocation7 + $0x285]]
    %v479 = vstv %s478
    %v480 = vmul.f32 %v245, %v479
    %v481 = vadd.f32 %v477, %v480
    %s482 = sld [smem:[#allocation7 + $0x305]]
    %v483 = vstv %s482
    %v484 = vmul.f32 %v264, %v483
    %v485 = vadd.f32 %v481, %v484
    %s486 = sld [smem:[#allocation7 + $0x385]]
    %v487 = vstv %s486
    %v488 = vmul.f32 %v283, %v487
    %v489 = vadd.f32 %v485, %v488
    %s490 = sld [smem:[#allocation9 + $0x5]]
    %v491 = vstv %s490
    %v492 = vadd.f32 %v489, %v491
    %v493 = vmax.f32 %v492, 0.0
    %s494 = sld [smem:[#allocation7 + $0x6]]
    %v495 = vstv %s494
    %v496 = vmul.f32 %v150, %v495
    %s497 = sld [smem:[#allocation7 + $0x86]]
    %v498 = vstv %s497
    %v499 = vmul.f32 %v169, %v498
    %v500 = vadd.f32 %v496, %v499
    %s501 = sld [smem:[#allocation7 + $0x106]]
    %v502 = vstv %s501
    %v503 = vmul.f32 %v188, %v502
    %v504 = vadd.f32 %v500, %v503
    %s505 = sld [smem:[#allocation7 + $0x186]]
    %v506 = vstv %s505
    %v507 = vmul.f32 %v207, %v506
    %v508 = vadd.f32 %v504, %v507
    %s509 = sld [smem:[#allocation7 + $0x206]]
    %v510 = vstv %s509
    %v511 = vmul.f32 %v226, %v510
    %v512 = vadd.f32 %v508, %v511
    %s513 = sld [smem:[#allocation7 + $0x286]]
    %v514 = vstv %s513
    %v515 = vmul.f32 %v245, %v514
    %v516 = vadd.f32 %v512, %v515
    %s517 = sld [smem:[#allocation7 + $0x306]]
    %v518 = vstv %s517
    %v519 = vmul.f32 %v264, %v518
    %v520 = vadd.f32 %v516, %v519
    %s521 = sld [smem:[#allocation7 + $0x386]]
    %v522 = vstv %s521
    %v523 = vmul.f32 %v283, %v522
    %v524 = vadd.f32 %v520, %v523
    %s525 = sld [smem:[#allocation9 + $0x6]]
    %v526 = vstv %s525
    %v527 = vadd.f32 %v524, %v526
    %v528 = vmax.f32 %v527, 0.0
    %s529 = sld [smem:[#allocation7 + $0x7]]
    %v530 = vstv %s529
    %v531 = vmul.f32 %v150, %v530
    %s532 = sld [smem:[#allocation7 + $0x87]]
    %v533 = vstv %s532
    %v534 = vmul.f32 %v169, %v533
    %v535 = vadd.f32 %v531, %v534
    %s536 = sld [smem:[#allocation7 + $0x107]]
    %v537 = vstv %s536
    %v538 = vmul.f32 %v188, %v537
    %v539 = vadd.f32 %v535, %v538
    %s540 = sld [smem:[#allocation7 + $0x187]]
    %v541 = vstv %s540
    %v542 = vmul.f32 %v207, %v541
    %v543 = vadd.f32 %v539, %v542
    %s544 = sld [smem:[#allocation7 + $0x207]]
    %v545 = vstv %s544
    %v546 = vmul.f32 %v226, %v545
    %v547 = vadd.f32 %v543, %v546
    %s548 = sld [smem:[#allocation7 + $0x287]]
    %v549 = vstv %s548
    %v550 = vmul.f32 %v245, %v549
    %v551 = vadd.f32 %v547, %v550
    %s552 = sld [smem:[#allocation7 + $0x307]]
    %v553 = vstv %s552
    %v554 = vmul.f32 %v264, %v553
    %v555 = vadd.f32 %v551, %v554
    %s556 = sld [smem:[#allocation7 + $0x387]]
    %v557 = vstv %s556
    %v558 = vmul.f32 %v283, %v557
    %v559 = vadd.f32 %v555, %v558
    %s560 = sld [smem:[#allocation9 + $0x7]]
    %v561 = vstv %s560
    %v562 = vadd.f32 %v559, %v561
    %v563 = vmax.f32 %v562, 0.0
    %s564 = sld [smem:[#allocation10]]
    %v565 = vstv %s564
    %v566 = vmul.f32 %v318, %v565
    %s567 = sld [smem:[#allocation10 + $0x80]]
    %v568 = vstv %s567
    %v569 = vmul.f32 %v353, %v568
    %v570 = vadd.f32 %v566, %v569
    %s571 = sld [smem:[#allocation10 + $0x100]]
    %v572 = vstv %s571
    %v573 = vmul.f32 %v388, %v572
    %v574 = vadd.f32 %v570, %v573
    %s575 = sld [smem:[#allocation10 + $0x180]]
    %v576 = vstv %s575
    %v577 = vmul.f32 %v423, %v576
    %v578 = vadd.f32 %v574, %v577
    %s579 = sld [smem:[#allocation10 + $0x200]]
    %v580 = vstv %s579
    %v581 = vmul.f32 %v458, %v580
    %v582 = vadd.f32 %v578, %v581
    %s583 = sld [smem:[#allocation10 + $0x280]]
    %v584 = vstv %s583
    %v585 = vmul.f32 %v493, %v584
    %v586 = vadd.f32 %v582, %v585
    %s587 = sld [smem:[#allocation10 + $0x300]]
    %v588 = vstv %s587
    %v589 = vmul.f32 %v528, %v588
    %v590 = vadd.f32 %v586, %v589
    %s591 = sld [smem:[#allocation10 + $0x380]]
    %v592 = vstv %s591
    %v593 = vmul.f32 %v563, %v592
    %v594 = vadd.f32 %v590, %v593
    %s595 = sld [smem:[#allocation12]]
    %v596 = vstv %s595
    %v597 = vadd.f32 %v594, %v596
    %v598 = vmax.f32 %v597, 0.0
    %s599 = sld [smem:[#allocation10 + $0x1]]
    %v600 = vstv %s599
    %v601 = vmul.f32 %v318, %v600
    %s602 = sld [smem:[#allocation10 + $0x81]]
    %v603 = vstv %s602
    %v604 = vmul.f32 %v353, %v603
    %v605 = vadd.f32 %v601, %v604
    %s606 = sld [smem:[#allocation10 + $0x101]]
    %v607 = vstv %s606
    %v608 = vmul.f32 %v388, %v607
    %v609 = vadd.f32 %v605, %v608
    %s610 = sld [smem:[#allocation10 + $0x181]]
    %v611 = vstv %s610
    %v612 = vmul.f32 %v423, %v611
    %v613 = vadd.f32 %v609, %v612
    %s614 = sld [smem:[#allocation10 + $0x201]]
    %v615 = vstv %s614
    %v616 = vmul.f32 %v458, %v615
    %v617 = vadd.f32 %v613, %v616
    %s618 = sld [smem:[#allocation10 + $0x281]]
    %v619 = vstv %s618
    %v620 = vmul.f32 %v493, %v619
    %v621 = vadd.f32 %v617, %v620
    %s622 = sld [smem:[#allocation10 + $0x301]]
    %v623 = vstv %s622
    %v624 = vmul.f32 %v528, %v623
    %v625 = vadd.f32 %v621, %v624
    %s626 = sld [smem:[#allocation10 + $0x381]]
    %v627 = vstv %s626
    %v628 = vmul.f32 %v563, %v627
    %v629 = vadd.f32 %v625, %v628
    %s630 = sld [smem:[#allocation12 + $0x1]]
    %v631 = vstv %s630
    %v632 = vadd.f32 %v629, %v631
    %v633 = vmax.f32 %v632, 0.0
    %s634 = sld [smem:[#allocation10 + $0x2]]
    %v635 = vstv %s634
    %v636 = vmul.f32 %v318, %v635
    %s637 = sld [smem:[#allocation10 + $0x82]]
    %v638 = vstv %s637
    %v639 = vmul.f32 %v353, %v638
    %v640 = vadd.f32 %v636, %v639
    %s641 = sld [smem:[#allocation10 + $0x102]]
    %v642 = vstv %s641
    %v643 = vmul.f32 %v388, %v642
    %v644 = vadd.f32 %v640, %v643
    %s645 = sld [smem:[#allocation10 + $0x182]]
    %v646 = vstv %s645
    %v647 = vmul.f32 %v423, %v646
    %v648 = vadd.f32 %v644, %v647
    %s649 = sld [smem:[#allocation10 + $0x202]]
    %v650 = vstv %s649
    %v651 = vmul.f32 %v458, %v650
    %v652 = vadd.f32 %v648, %v651
    %s653 = sld [smem:[#allocation10 + $0x282]]
    %v654 = vstv %s653
    %v655 = vmul.f32 %v493, %v654
    %v656 = vadd.f32 %v652, %v655
    %s657 = sld [smem:[#allocation10 + $0x302]]
    %v658 = vstv %s657
    %v659 = vmul.f32 %v528, %v658
    %v660 = vadd.f32 %v656, %v659
    %s661 = sld [smem:[#allocation10 + $0x382]]
    %v662 = vstv %s661
    %v663 = vmul.f32 %v563, %v662
    %v664 = vadd.f32 %v660, %v663
    %s665 = sld [smem:[#allocation12 + $0x2]]
    %v666 = vstv %s665
    %v667 = vadd.f32 %v664, %v666
    %v668 = vmax.f32 %v667, 0.0
    %s669 = sld [smem:[#allocation10 + $0x3]]
    %v670 = vstv %s669
    %v671 = vmul.f32 %v318, %v670
    %s672 = sld [smem:[#allocation10 + $0x83]]
    %v673 = vstv %s672
    %v674 = vmul.f32 %v353, %v673
    %v675 = vadd.f32 %v671, %v674
    %s676 = sld [smem:[#allocation10 + $0x103]]
    %v677 = vstv %s676
    %v678 = vmul.f32 %v388, %v677
    %v679 = vadd.f32 %v675, %v678
    %s680 = sld [smem:[#allocation10 + $0x183]]
    %v681 = vstv %s680
    %v682 = vmul.f32 %v423, %v681
    %v683 = vadd.f32 %v679, %v682
    %s684 = sld [smem:[#allocation10 + $0x203]]
    %v685 = vstv %s684
    %v686 = vmul.f32 %v458, %v685
    %v687 = vadd.f32 %v683, %v686
    %s688 = sld [smem:[#allocation10 + $0x283]]
    %v689 = vstv %s688
    %v690 = vmul.f32 %v493, %v689
    %v691 = vadd.f32 %v687, %v690
    %s692 = sld [smem:[#allocation10 + $0x303]]
    %v693 = vstv %s692
    %v694 = vmul.f32 %v528, %v693
    %v695 = vadd.f32 %v691, %v694
    %s696 = sld [smem:[#allocation10 + $0x383]]
    %v697 = vstv %s696
    %v698 = vmul.f32 %v563, %v697
    %v699 = vadd.f32 %v695, %v698
    %s700 = sld [smem:[#allocation12 + $0x3]]
    %v701 = vstv %s700
    %v702 = vadd.f32 %v699, %v701
    %v703 = vmax.f32 %v702, 0.0
    %s704 = sld [smem:[#allocation10 + $0x4]]
    %v705 = vstv %s704
    %v706 = vmul.f32 %v318, %v705
    %s707 = sld [smem:[#allocation10 + $0x84]]
    %v708 = vstv %s707
    %v709 = vmul.f32 %v353, %v708
    %v710 = vadd.f32 %v706, %v709
    %s711 = sld [smem:[#allocation10 + $0x104]]
    %v712 = vstv %s711
    %v713 = vmul.f32 %v388, %v712
    %v714 = vadd.f32 %v710, %v713
    %s715 = sld [smem:[#allocation10 + $0x184]]
    %v716 = vstv %s715
    %v717 = vmul.f32 %v423, %v716
    %v718 = vadd.f32 %v714, %v717
    %s719 = sld [smem:[#allocation10 + $0x204]]
    %v720 = vstv %s719
    %v721 = vmul.f32 %v458, %v720
    %v722 = vadd.f32 %v718, %v721
    %s723 = sld [smem:[#allocation10 + $0x284]]
    %v724 = vstv %s723
    %v725 = vmul.f32 %v493, %v724
    %v726 = vadd.f32 %v722, %v725
    %s727 = sld [smem:[#allocation10 + $0x304]]
    %v728 = vstv %s727
    %v729 = vmul.f32 %v528, %v728
    %v730 = vadd.f32 %v726, %v729
    %s731 = sld [smem:[#allocation10 + $0x384]]
    %v732 = vstv %s731
    %v733 = vmul.f32 %v563, %v732
    %v734 = vadd.f32 %v730, %v733
    %s735 = sld [smem:[#allocation12 + $0x4]]
    %v736 = vstv %s735
    %v737 = vadd.f32 %v734, %v736
    %v738 = vmax.f32 %v737, 0.0
    %s739 = sld [smem:[#allocation10 + $0x5]]
    %v740 = vstv %s739
    %v741 = vmul.f32 %v318, %v740
    %s742 = sld [smem:[#allocation10 + $0x85]]
    %v743 = vstv %s742
    %v744 = vmul.f32 %v353, %v743
    %v745 = vadd.f32 %v741, %v744
    %s746 = sld [smem:[#allocation10 + $0x105]]
    %v747 = vstv %s746
    %v748 = vmul.f32 %v388, %v747
    %v749 = vadd.f32 %v745, %v748
    %s750 = sld [smem:[#allocation10 + $0x185]]
    %v751 = vstv %s750
    %v752 = vmul.f32 %v423, %v751
    %v753 = vadd.f32 %v749, %v752
    %s754 = sld [smem:[#allocation10 + $0x205]]
    %v755 = vstv %s754
    %v756 = vmul.f32 %v458, %v755
    %v757 = vadd.f32 %v753, %v756
    %s758 = sld [smem:[#allocation10 + $0x285]]
    %v759 = vstv %s758
    %v760 = vmul.f32 %v493, %v759
    %v761 = vadd.f32 %v757, %v760
    %s762 = sld [smem:[#allocation10 + $0x305]]
    %v763 = vstv %s762
    %v764 = vmul.f32 %v528, %v763
    %v765 = vadd.f32 %v761, %v764
    %s766 = sld [smem:[#allocation10 + $0x385]]
    %v767 = vstv %s766
    %v768 = vmul.f32 %v563, %v767
    %v769 = vadd.f32 %v765, %v768
    %s770 = sld [smem:[#allocation12 + $0x5]]
    %v771 = vstv %s770
    %v772 = vadd.f32 %v769, %v771
    %v773 = vmax.f32 %v772, 0.0
    %s774 = sld [smem:[#allocation10 + $0x6]]
    %v775 = vstv %s774
    %v776 = vmul.f32 %v318, %v775
    %s777 = sld [smem:[#allocation10 + $0x86]]
    %v778 = vstv %s777
    %v779 = vmul.f32 %v353, %v778
    %v780 = vadd.f32 %v776, %v779
    %s781 = sld [smem:[#allocation10 + $0x106]]
    %v782 = vstv %s781
    %v783 = vmul.f32 %v388, %v782
    %v784 = vadd.f32 %v780, %v783
    %s785 = sld [smem:[#allocation10 + $0x186]]
    %v786 = vstv %s785
    %v787 = vmul.f32 %v423, %v786
    %v788 = vadd.f32 %v784, %v787
    %s789 = sld [smem:[#allocation10 + $0x206]]
    %v790 = vstv %s789
    %v791 = vmul.f32 %v458, %v790
    %v792 = vadd.f32 %v788, %v791
    %s793 = sld [smem:[#allocation10 + $0x286]]
    %v794 = vstv %s793
    %v795 = vmul.f32 %v493, %v794
    %v796 = vadd.f32 %v792, %v795
    %s797 = sld [smem:[#allocation10 + $0x306]]
    %v798 = vstv %s797
    %v799 = vmul.f32 %v528, %v798
    %v800 = vadd.f32 %v796, %v799
    %s801 = sld [smem:[#allocation10 + $0x386]]
    %v802 = vstv %s801
    %v803 = vmul.f32 %v563, %v802
    %v804 = vadd.f32 %v800, %v803
    %s805 = sld [smem:[#allocation12 + $0x6]]
    %v806 = vstv %s805
    %v807 = vadd.f32 %v804, %v806
    %v808 = vmax.f32 %v807, 0.0
    %s809 = sld [smem:[#allocation10 + $0x7]]
    %v810 = vstv %s809
    %v811 = vmul.f32 %v318, %v810
    %s812 = sld [smem:[#allocation10 + $0x87]]
    %v813 = vstv %s812
    %v814 = vmul.f32 %v353, %v813
    %v815 = vadd.f32 %v811, %v814
    %s816 = sld [smem:[#allocation10 + $0x107]]
    %v817 = vstv %s816
    %v818 = vmul.f32 %v388, %v817
    %v819 = vadd.f32 %v815, %v818
    %s820 = sld [smem:[#allocation10 + $0x187]]
    %v821 = vstv %s820
    %v822 = vmul.f32 %v423, %v821
    %v823 = vadd.f32 %v819, %v822
    %s824 = sld [smem:[#allocation10 + $0x207]]
    %v825 = vstv %s824
    %v826 = vmul.f32 %v458, %v825
    %v827 = vadd.f32 %v823, %v826
    %s828 = sld [smem:[#allocation10 + $0x287]]
    %v829 = vstv %s828
    %v830 = vmul.f32 %v493, %v829
    %v831 = vadd.f32 %v827, %v830
    %s832 = sld [smem:[#allocation10 + $0x307]]
    %v833 = vstv %s832
    %v834 = vmul.f32 %v528, %v833
    %v835 = vadd.f32 %v831, %v834
    %s836 = sld [smem:[#allocation10 + $0x387]]
    %v837 = vstv %s836
    %v838 = vmul.f32 %v563, %v837
    %v839 = vadd.f32 %v835, %v838
    %s840 = sld [smem:[#allocation12 + $0x7]]
    %v841 = vstv %s840
    %v842 = vadd.f32 %v839, %v841
    %v843 = vmax.f32 %v842, 0.0
    %s844 = sld [smem:[#allocation13]]
    %v845 = vstv %s844
    %v846 = vmul.f32 %v598, %v845
    %s847 = sld [smem:[#allocation13 + $0x80]]
    %v848 = vstv %s847
    %v849 = vmul.f32 %v633, %v848
    %v850 = vadd.f32 %v846, %v849
    %s851 = sld [smem:[#allocation13 + $0x100]]
    %v852 = vstv %s851
    %v853 = vmul.f32 %v668, %v852
    %v854 = vadd.f32 %v850, %v853
    %s855 = sld [smem:[#allocation13 + $0x180]]
    %v856 = vstv %s855
    %v857 = vmul.f32 %v703, %v856
    %v858 = vadd.f32 %v854, %v857
    %s859 = sld [smem:[#allocation13 + $0x200]]
    %v860 = vstv %s859
    %v861 = vmul.f32 %v738, %v860
    %v862 = vadd.f32 %v858, %v861
    %s863 = sld [smem:[#allocation13 + $0x280]]
    %v864 = vstv %s863
    %v865 = vmul.f32 %v773, %v864
    %v866 = vadd.f32 %v862, %v865
    %s867 = sld [smem:[#allocation13 + $0x300]]
    %v868 = vstv %s867
    %v869 = vmul.f32 %v808, %v868
    %v870 = vadd.f32 %v866, %v869
    %s871 = sld [smem:[#allocation13 + $0x380]]
    %v872 = vstv %s871
    %v873 = vmul.f32 %v843, %v872
    %v874 = vadd.f32 %v870, %v873
    %s875 = sld [smem:[#allocation15]]
    %v876 = vstv %s875
    %v877 = vadd.f32 %v874, %v876
    %s878 = sld [smem:[#allocation13 + $0x1]]
    %v879 = vstv %s878
    %v880 = vmul.f32 %v598, %v879
    %s881 = sld [smem:[#allocation13 + $0x81]]
    %v882 = vstv %s881
    %v883 = vmul.f32 %v633, %v882
    %v884 = vadd.f32 %v880, %v883
    %s885 = sld [smem:[#allocation13 + $0x101]]
    %v886 = vstv %s885
    %v887 = vmul.f32 %v668, %v886
    %v888 = vadd.f32 %v884, %v887
    %s889 = sld [smem:[#allocation13 + $0x181]]
    %v890 = vstv %s889
    %v891 = vmul.f32 %v703, %v890
    %v892 = vadd.f32 %v888, %v891
    %s893 = sld [smem:[#allocation13 + $0x201]]
    %v894 = vstv %s893
    %v895 = vmul.f32 %v738, %v894
    %v896 = vadd.f32 %v892, %v895
    %s897 = sld [smem:[#allocation13 + $0x281]]
    %v898 = vstv %s897
    %v899 = vmul.f32 %v773, %v898
    %v900 = vadd.f32 %v896, %v899
    %s901 = sld [smem:[#allocation13 + $0x301]]
    %v902 = vstv %s901
    %v903 = vmul.f32 %v808, %v902
    %v904 = vadd.f32 %v900, %v903
    %s905 = sld [smem:[#allocation13 + $0x381]]
    %v906 = vstv %s905
    %v907 = vmul.f32 %v843, %v906
    %v908 = vadd.f32 %v904, %v907
    %s909 = sld [smem:[#allocation15 + $0x1]]
    %v910 = vstv %s909
    %v911 = vadd.f32 %v908, %v910
    %s912 = sld [smem:[#allocation13 + $0x2]]
    %v913 = vstv %s912
    %v914 = vmul.f32 %v598, %v913
    %s915 = sld [smem:[#allocation13 + $0x82]]
    %v916 = vstv %s915
    %v917 = vmul.f32 %v633, %v916
    %v918 = vadd.f32 %v914, %v917
    %s919 = sld [smem:[#allocation13 + $0x102]]
    %v920 = vstv %s919
    %v921 = vmul.f32 %v668, %v920
    %v922 = vadd.f32 %v918, %v921
    %s923 = sld [smem:[#allocation13 + $0x182]]
    %v924 = vstv %s923
    %v925 = vmul.f32 %v703, %v924
    %v926 = vadd.f32 %v922, %v925
    %s927 = sld [smem:[#allocation13 + $0x202]]
    %v928 = vstv %s927
    %v929 = vmul.f32 %v738, %v928
    %v930 = vadd.f32 %v926, %v929
    %s931 = sld [smem:[#allocation13 + $0x282]]
    %v932 = vstv %s931
    %v933 = vmul.f32 %v773, %v932
    %v934 = vadd.f32 %v930, %v933
    %s935 = sld [smem:[#allocation13 + $0x302]]
    %v936 = vstv %s935
    %v937 = vmul.f32 %v808, %v936
    %v938 = vadd.f32 %v934, %v937
    %s939 = sld [smem:[#allocation13 + $0x382]]
    %v940 = vstv %s939
    %v941 = vmul.f32 %v843, %v940
    %v942 = vadd.f32 %v938, %v941
    %s943 = sld [smem:[#allocation15 + $0x2]]
    %v944 = vstv %s943
    %v945 = vadd.f32 %v942, %v944
    %946 = vst [vmem:[#allocation16] sm:$0x1] %v877
    %s947 = scalar_lea.vmem [#allocation16], 1
    %948 = vst [vmem:[%s947] sm:$0x1] %v911
    %s949 = scalar_lea.vmem [#allocation16], 2
    %950 = vst [vmem:[%s949] sm:$0x1] %v945
    // Predicated region
    $region70: #{tpu_custom_call.1} parent=1 // pred_check
      _
    $region71: #{tpu_custom_call.1} parent=1 // pred_check_branch
      %952 = sbr.rel (0) target = $region73
    $region72: #{tpu_custom_call.1} parent=1 // pred_region
      %s954 = ssub.s32 48, 48
      %955 = vsyncadd [#allocation3], %s954
      %s956 = sshll.u32 [#allocation16], 4
      %s957 = int_to_ptr.vmem [resolvable:$true] %s956
      %962 = dma.vmem_to_hbm [thread:$0]  %s957, 48, %s9, [#allocation3], 16, 16, 1
    $region73: #{tpu_custom_call.1} parent=1 // pred_fallthru
      _
    // Predicated region
    $region74: #{tpu_custom_call.1} parent=1 // pred_check
      _
    $region75: #{tpu_custom_call.1} parent=1 // pred_check_branch
      %964 = sbr.rel (0) target = $region77
    $region76: #{tpu_custom_call.1} parent=1 // pred_region
      %965 = dma.done [#allocation3], 48
    $region77: #{tpu_custom_call.1} parent=1 // pred_fallthru
      _
    %966 = vsyncpa [#allocation3], 1
    %967 = vsyncpa [#allocation4], 1
    %968 = vsyncpa [#allocation5], 1
    %969 = vsyncpa [#allocation8], 1
    %970 = vsyncpa [#allocation11], 1
    %971 = vsyncpa [#allocation14], 1

</llo_original>
